<compile_context>
chip_gen: v7x
topology: tpu7x:2x2x1
jax: 0.10.0
libtpu: 0.0.40
codegen_flags: <defaults>
</compile_context>

<pallas_src>
import jax
import jax.numpy as jnp
from jax import lax
from jax.experimental import pallas as pl
from jax.experimental.pallas import tpu as pltpu

# ---- small, deterministic config consistent with the module's forward ----
VOCAB = 50
EMB = 32                    # embedding dim 'e'  (conv W dimension)
SEQ = 16                    # sequence length 's' (conv H dimension)
BATCH = 2                   # batch 'b'
C_OUT = 8                   # conv output channels
KH = KW = 3                 # conv kernel size (padding=1)
POOL = 2
HP, WP = SEQ // POOL, EMB // POOL
CONV_FLATTEN_SIZE = C_OUT * HP * WP     # 8*8*16 = 1024
CONTEXT_SIZE = 64
LANES = C_OUT * EMB                      # 256: conv accumulator lane width
PLANE_ROWS = 2 * SEQ + 4                 # 36: [pad, x0, pad, pad, x1, pad] stacked rows
ACC_ROWS = 2 * SEQ + 2                   # 34: conv out rows 0..15 -> b0, 18..33 -> b1


def fused_encoder_kernel(ids_ref, emb_ref, wexp_ref, bexp_ref, fcb_ref, wfc_hbm_ref,
                         out_ref, wfc_vmem, wfc_sem):
    """Fused embedding gather + Conv(1->C_OUT,3x3,pad=1) + ReLU + MaxPool2d(2) + Linear.

    ids_ref : VMEM (B*S, 1) int32       token ids, b-major
    emb_ref : VMEM (VOCAB, E)           embedding table
    wexp_ref: VMEM (KH*KW, C_OUT*E)     conv taps, each channel's tap broadcast over its E lanes
    bexp_ref: VMEM (1, C_OUT*E)         conv bias, broadcast the same way
    fcb_ref : VMEM (1, K)               fc bias
    wfc_hbm_ref: ANY (1024, K)          fc weight, permuted to kernel feature order (manual DMA)
    out_ref : VMEM (B, K)               context output
    wfc_vmem: VMEM (1024, K) scratch    landing buffer for the fc weight DMA
    wfc_sem : DMA semaphore
    """
    # Kick the fc-weight DMA off immediately so it overlaps gather + conv + pool.
    wfc_copy = pltpu.make_async_copy(wfc_hbm_ref, wfc_vmem, wfc_sem)
    wfc_copy.start()

    # --- embedding lookup as a one-hot matmul (vectorized gather) -------------------
    # TODO(synk): Dropout(0.5) is identity in eval mode; training-mode forward would
    #             draw a mask via pltpu.prng_random_bits.
    # Note: an out-of-range token id yields an all-zero one-hot row (zero embedding),
    # so there is no unchecked dynamic VMEM read anymore.
    ids = ids_ref[...]                                              # [B*S, 1] int32
    vocab_iota = lax.broadcasted_iota(jnp.int32, (BATCH * SEQ, VOCAB), 1)
    onehot = jnp.where(ids == vocab_iota, 1.0, 0.0)                 # [B*S, VOCAB] f32
    x_all = jnp.dot(onehot, emb_ref[...],
                    preferred_element_type=jnp.float32)             # [B*S, E], rows 0..15=b0

    # --- batch-stacked zero-padded plane for the 3x3 / pad=1 conv --------------------
    zrow = jnp.zeros((1, EMB), jnp.float32)
    z2row = jnp.zeros((2, EMB), jnp.float32)
    xp = jnp.concatenate([zrow, x_all[:SEQ], z2row, x_all[SEQ:], zrow], axis=0)  # [36, E]
    zcol = jnp.zeros((PLANE_ROWS, 1), jnp.float32)
    xp = jnp.concatenate([zcol, xp, zcol], axis=1)                  # [36, E+2]

    # --- conv: all C_OUT channels and both images at once, channels tiled along lanes -
    wexp = wexp_ref[...]                                            # [9, C_OUT*E]
    acc = jnp.broadcast_to(bexp_ref[...], (ACC_ROWS, LANES))        # bias folded into init
    for kw in range(KW):
        # channel lane-replication hoisted out of the kh loop (3 tiled planes total)
        tiled_kw = jnp.concatenate([xp[:, kw:kw + EMB]] * C_OUT, axis=1)   # [36, 256]
        for kh in range(KH):
            t = kh * KW + kw
            acc = acc + tiled_kw[kh:kh + ACC_ROWS, :] * wexp[t:t + 1, :]
    acc = jnp.maximum(acc, 0.0)                                     # ReLU (rows 16,17 unused)

    # --- 2x2 max pool (stride 2), kept 256-lane / full-sublane aligned ---------------
    # lane (width) pair max: wrap-shift by one lane (the wrapped element lands in an
    # odd, discarded column), spelled with slice+concat for unambiguous semantics.
    acc_sh = jnp.concatenate([acc[:, 1:], acc[:, :1]], axis=1)
    mh = jnp.maximum(acc, acc_sh)                                   # even lanes = pair max
    # even-lane downsample folded into a tiny in-register 0/1 MXU matmul
    jj = lax.broadcasted_iota(jnp.int32, (LANES, C_OUT * WP), 0)
    ww = lax.broadcasted_iota(jnp.int32, (LANES, C_OUT * WP), 1)
    d_sel = jnp.where(jj == 2 * ww, 1.0, 0.0)                       # [256, 128]
    p1 = jnp.dot(mh, d_sel, preferred_element_type=jnp.float32)     # [34, 128]
    # row (seq) pair max, same wrap-shift trick along sublanes
    p1_sh = jnp.concatenate([p1[1:], p1[:1]], axis=0)
    p2 = jnp.maximum(p1, p1_sh)                                     # even rows = pair max
    # even-row downsample + batch de-stack folded into a second 0/1 matmul:
    # output row i = 2h + b picks acc-space row 2h + 18b  (= i + 17*(i & 1)).
    ii = lax.broadcasted_iota(jnp.int32, (BATCH * HP, ACC_ROWS), 0)
    rr = lax.broadcasted_iota(jnp.int32, (BATCH * HP, ACC_ROWS), 1)
    s_sel = jnp.where(rr == ii + (SEQ + 1) * (ii & 1), 1.0, 0.0)    # [16, 34]
    pooled = jnp.dot(s_sel, p2, preferred_element_type=jnp.float32) # [16, 128], row=2h+b

    # --- Linear: single [B, 1024] @ [1024, K] contraction -----------------------------
    # flatten = lane-concat of the 8 contiguous 2-row slices (h-major feature order).
    feats = jnp.concatenate([pooled[2 * h:2 * h + 2] for h in range(HP)], axis=1)  # [B,1024]
    wfc_copy.wait()                                                 # fc weight DMA done
    ctx = jnp.dot(feats, wfc_vmem[...], preferred_element_type=jnp.float32)
    out_ref[...] = ctx + fcb_ref[...]


def source_image_encoder(idx, emb_table, conv_w, conv_b, fc_w, fc_b):
    """idx: [S, B] int32; conv_w: [C_OUT, KH, KW] (in-channel squeezed); conv_b: [C_OUT];
    fc_w: [CONTEXT_SIZE, CONV_FLATTEN_SIZE] (PyTorch Linear layout); fc_b: [CONTEXT_SIZE]."""
    # One-time re-layouts (cheap XLA ops on params/indices, outside the kernel):
    ids = idx.T.reshape(BATCH * SEQ, 1).astype(jnp.int32)            # b-major token ids
    # conv taps / bias broadcast over each channel's E-wide lane block.
    wflat = conv_w.reshape(C_OUT, KH * KW)                           # [c, t]
    w_exp = jnp.repeat(wflat.T[:, :, None], EMB, axis=2).reshape(KH * KW, LANES)
    b_exp = jnp.repeat(conv_b[:, None], EMB, axis=1).reshape(1, LANES)
    # fc weight: PyTorch flatten order (c, h, w) -> kernel feature order (h, c, w).
    w_fc = fc_w.reshape(CONTEXT_SIZE, C_OUT, HP, WP).transpose(2, 1, 3, 0)
    w_fc = w_fc.reshape(CONV_FLATTEN_SIZE, CONTEXT_SIZE)             # [1024, K]
    fc_b2 = fc_b.reshape(1, CONTEXT_SIZE)

    grid_spec = pltpu.PrefetchScalarGridSpec(
        num_scalar_prefetch=0,
        grid=(1,),                            # whole problem in one grid step (B=2 is tiny)
        in_specs=[
            pl.BlockSpec((BATCH * SEQ, 1), lambda i: (0, 0)),
            pl.BlockSpec((VOCAB, EMB), lambda i: (0, 0)),
            pl.BlockSpec((KH * KW, LANES), lambda i: (0, 0)),
            pl.BlockSpec((1, LANES), lambda i: (0, 0)),
            pl.BlockSpec((1, CONTEXT_SIZE), lambda i: (0, 0)),
            pl.BlockSpec(memory_space=pl.ANY),          # fc weight: manual DMA, overlapped
        ],
        out_specs=pl.BlockSpec((BATCH, CONTEXT_SIZE), lambda i: (0, 0)),
        scratch_shapes=[
            pltpu.VMEM((CONV_FLATTEN_SIZE, CONTEXT_SIZE), jnp.float32),
            pltpu.SemaphoreType.DMA,
        ],
    )
    return pl.pallas_call(
        fused_encoder_kernel,
        out_shape=jax.ShapeDtypeStruct((BATCH, CONTEXT_SIZE), jnp.float32),
        grid_spec=grid_spec,
        # Single grid step; batch axis is collapsed into the kernel body.  If B ever grows
        # beyond toy size, expose it as a leading grid axis marked "parallel" so v7x's two
        # TensorCores split it; at B=2 sharding overhead would not pay off.
        compiler_params=pltpu.CompilerParams(dimension_semantics=("arbitrary",)),
    )(ids, emb_table, w_exp, b_exp, fc_b2, w_fc)


def reference_forward(idx, emb_table, conv_w, conv_b, fc_w, fc_b):
    """Pure-JAX reference of the PyTorch forward (eval mode)."""
    emb = jnp.take(emb_table, idx, axis=0)                       # [S, B, E]
    x = jnp.transpose(emb, (1, 0, 2))[:, None, :, :]             # [B, 1, S, E] NCHW
    y = lax.conv_general_dilated(
        x, conv_w[:, None, :, :], window_strides=(1, 1),
        padding=((1, 1), (1, 1)),
        dimension_numbers=("NCHW", "OIHW", "NCHW"),
        precision=lax.Precision.HIGHEST)
    y = jnp.maximum(y + conv_b[None, :, None, None], 0.0)        # [B, C, S, E]
    y = y.reshape(BATCH, C_OUT, HP, POOL, WP, POOL).max(axis=(3, 5))
    feats = y.reshape(BATCH, CONV_FLATTEN_SIZE)                  # PyTorch (C,H,W) flatten
    return jnp.dot(feats, fc_w.T, precision=lax.Precision.HIGHEST) + fc_b[None, :]


if __name__ == "__main__":
    key = jax.random.PRNGKey(0)
    k_idx, k_emb, k_cw, k_cb, k_fw, k_fb = jax.random.split(key, 6)

    # deterministic inputs / parameters
    idx = jax.random.randint(k_idx, (SEQ, BATCH), 0, VOCAB, dtype=jnp.int32)
    emb_table = jax.random.normal(k_emb, (VOCAB, EMB), jnp.float32) * 0.1
    # PyTorch Conv2d weight is [C_OUT, 1, 3, 3]; the singleton in-channel is squeezed.
    conv_w = jax.random.normal(k_cw, (C_OUT, KH, KW), jnp.float32) * 0.1
    conv_b = jax.random.normal(k_cb, (C_OUT,), jnp.float32) * 0.1
    # PyTorch Linear weight layout [context, conv_flatten_size].
    fc_w = jax.random.normal(k_fw, (CONTEXT_SIZE, CONV_FLATTEN_SIZE), jnp.float32) * 0.02
    fc_b = jax.random.normal(k_fb, (CONTEXT_SIZE,), jnp.float32) * 0.02

    fwd = jax.jit(source_image_encoder)
    context = jax.block_until_ready(fwd(idx, emb_table, conv_w, conv_b, fc_w, fc_b))
    assert context.shape == (BATCH, CONTEXT_SIZE)

    expected = jax.block_until_ready(
        reference_forward(idx, emb_table, conv_w, conv_b, fc_w, fc_b))
    assert jnp.allclose(context, expected, atol=2e-3, rtol=2e-3), (
        float(jnp.max(jnp.abs(context - expected))))

    print("KERNEL_OK")
</pallas_src>

<mosaic_0001>
module attributes {stable_mosaic.version = 11 : i64} {
  func.func @fused_encoder_kernel(%arg0: i32, %arg1: memref<32x1xi32, #tpu.memory_space<vmem>>, %arg2: memref<50x32xf32, #tpu.memory_space<vmem>>, %arg3: memref<9x256xf32, #tpu.memory_space<vmem>>, %arg4: memref<1x256xf32, #tpu.memory_space<vmem>>, %arg5: memref<1x64xf32, #tpu.memory_space<vmem>>, %arg6: memref<1024x64xf32, #tpu.memory_space<any>>, %arg7: memref<2x64xf32, #tpu.memory_space<vmem>>, %arg8: memref<1024x64xf32, #tpu.memory_space<vmem>>, %arg9: memref<!tpu.dma_semaphore, #tpu.memory_space<semaphore_mem>>) attributes {dimension_semantics = [#tpu.dimension_semantics<arbitrary>], iteration_bounds = array<i64: 1>, scalar_prefetch = 0 : i64, scratch_operands = 2 : i64, tpu.core_type = #tpu.core_type<tc>, window_params = [{pipeline_mode = #tpu.pipeline_mode<synchronous>, transform_indices = @transform_0, window_bounds = array<i64: 32, 1>}, {pipeline_mode = #tpu.pipeline_mode<synchronous>, transform_indices = @transform_1, window_bounds = array<i64: 50, 32>}, {pipeline_mode = #tpu.pipeline_mode<synchronous>, transform_indices = @transform_2, window_bounds = array<i64: 9, 256>}, {pipeline_mode = #tpu.pipeline_mode<synchronous>, transform_indices = @transform_3, window_bounds = array<i64: 1, 256>}, {pipeline_mode = #tpu.pipeline_mode<synchronous>, transform_indices = @transform_4, window_bounds = array<i64: 1, 64>}, {}, {pipeline_mode = #tpu.pipeline_mode<synchronous>, transform_indices = @transform_6, window_bounds = array<i64: 2, 64>}]} {
    tpu.enqueue_dma source(%arg6 : memref<1024x64xf32, #tpu.memory_space<any>>) target(%arg8 : memref<1024x64xf32, #tpu.memory_space<vmem>>) target_semaphore(%arg9 : memref<!tpu.dma_semaphore, #tpu.memory_space<semaphore_mem>>)
    %c0 = arith.constant 0 : index
    %c0_0 = arith.constant 0 : index
    %0 = vector.load %arg1[%c0, %c0_0] : memref<32x1xi32, #tpu.memory_space<vmem>>, vector<32x1xi32>
    %1 = tpu.iota {dimensions = array<i32: 1>} : vector<32x50xi32>
    %2 = vector.broadcast %0 : vector<32x1xi32> to vector<32x50xi32>
    %3 = arith.cmpi eq, %2, %1 : vector<32x50xi32>
    %cst = arith.constant 1.000000e+00 : f32
    %cst_1 = arith.constant 0.000000e+00 : f32
    %4 = vector.broadcast %cst : f32 to vector<32x50xf32>
    %5 = vector.broadcast %cst_1 : f32 to vector<32x50xf32>
    %6 = arith.select %3, %4, %5 : vector<32x50xi1>, vector<32x50xf32>
    %c0_2 = arith.constant 0 : index
    %c0_3 = arith.constant 0 : index
    %7 = vector.load %arg2[%c0_2, %c0_3] : memref<50x32xf32, #tpu.memory_space<vmem>>, vector<50x32xf32>
    %cst_4 = arith.constant dense<0.000000e+00> : vector<32x32xf32>
    %8 = tpu.matmul %6, %7, %cst_4 {dimension_numbers = #tpu.dot_dimension_numbers<[1], [0], [0], [1], [0, 0, 1, 1], [], []>} : vector<32x50xf32>, vector<50x32xf32>, vector<32x32xf32> -> vector<32x32xf32>
    %cst_5 = arith.constant 0.000000e+00 : f32
    %9 = vector.broadcast %cst_5 : f32 to vector<1x32xf32>
    %cst_6 = arith.constant 0.000000e+00 : f32
    %10 = vector.broadcast %cst_6 : f32 to vector<2x32xf32>
    %11 = vector.extract_strided_slice %8 {offsets = [0, 0], sizes = [16, 32], strides = [1, 1]} : vector<32x32xf32> to vector<16x32xf32>
    %12 = vector.extract_strided_slice %8 {offsets = [16, 0], sizes = [16, 32], strides = [1, 1]} : vector<32x32xf32> to vector<16x32xf32>
    %13 = tpu.concatenate %9, %11, %10, %12, %9 in 0 : vector<1x32xf32>, vector<16x32xf32>, vector<2x32xf32>, vector<16x32xf32>, vector<1x32xf32> -> vector<36x32xf32>
    %cst_7 = arith.constant 0.000000e+00 : f32
    %14 = vector.broadcast %cst_7 : f32 to vector<36x1xf32>
    %15 = tpu.concatenate %14, %13, %14 in 1 : vector<36x1xf32>, vector<36x32xf32>, vector<36x1xf32> -> vector<36x34xf32>
    %c0_8 = arith.constant 0 : index
    %c0_9 = arith.constant 0 : index
    %16 = vector.load %arg3[%c0_8, %c0_9] : memref<9x256xf32, #tpu.memory_space<vmem>>, vector<9x256xf32>
    %c0_10 = arith.constant 0 : index
    %c0_11 = arith.constant 0 : index
    %17 = vector.load %arg4[%c0_10, %c0_11] : memref<1x256xf32, #tpu.memory_space<vmem>>, vector<1x256xf32>
    %18 = vector.shape_cast %17 : vector<1x256xf32> to vector<1x256xf32>
    %19 = vector.broadcast %18 : vector<1x256xf32> to vector<34x256xf32>
    %20 = vector.extract_strided_slice %15 {offsets = [0, 0], sizes = [36, 32], strides = [1, 1]} : vector<36x34xf32> to vector<36x32xf32>
    %21 = tpu.concatenate %20, %20, %20, %20, %20, %20, %20, %20 in 1 : vector<36x32xf32>, vector<36x32xf32>, vector<36x32xf32>, vector<36x32xf32>, vector<36x32xf32>, vector<36x32xf32>, vector<36x32xf32>, vector<36x32xf32> -> vector<36x256xf32>
    %22 = vector.extract_strided_slice %21 {offsets = [0, 0], sizes = [34, 256], strides = [1, 1]} : vector<36x256xf32> to vector<34x256xf32>
    %23 = vector.extract_strided_slice %16 {offsets = [0, 0], sizes = [1, 256], strides = [1, 1]} : vector<9x256xf32> to vector<1x256xf32>
    %24 = vector.broadcast %23 : vector<1x256xf32> to vector<34x256xf32>
    %25 = arith.mulf %22, %24 : vector<34x256xf32>
    %26 = arith.addf %19, %25 : vector<34x256xf32>
    %27 = vector.extract_strided_slice %21 {offsets = [1, 0], sizes = [34, 256], strides = [1, 1]} : vector<36x256xf32> to vector<34x256xf32>
    %28 = vector.extract_strided_slice %16 {offsets = [3, 0], sizes = [1, 256], strides = [1, 1]} : vector<9x256xf32> to vector<1x256xf32>
    %29 = vector.broadcast %28 : vector<1x256xf32> to vector<34x256xf32>
    %30 = arith.mulf %27, %29 : vector<34x256xf32>
    %31 = arith.addf %26, %30 : vector<34x256xf32>
    %32 = vector.extract_strided_slice %21 {offsets = [2, 0], sizes = [34, 256], strides = [1, 1]} : vector<36x256xf32> to vector<34x256xf32>
    %33 = vector.extract_strided_slice %16 {offsets = [6, 0], sizes = [1, 256], strides = [1, 1]} : vector<9x256xf32> to vector<1x256xf32>
    %34 = vector.broadcast %33 : vector<1x256xf32> to vector<34x256xf32>
    %35 = arith.mulf %32, %34 : vector<34x256xf32>
    %36 = arith.addf %31, %35 : vector<34x256xf32>
    %37 = vector.extract_strided_slice %15 {offsets = [0, 1], sizes = [36, 32], strides = [1, 1]} : vector<36x34xf32> to vector<36x32xf32>
    %38 = tpu.concatenate %37, %37, %37, %37, %37, %37, %37, %37 in 1 : vector<36x32xf32>, vector<36x32xf32>, vector<36x32xf32>, vector<36x32xf32>, vector<36x32xf32>, vector<36x32xf32>, vector<36x32xf32>, vector<36x32xf32> -> vector<36x256xf32>
    %39 = vector.extract_strided_slice %38 {offsets = [0, 0], sizes = [34, 256], strides = [1, 1]} : vector<36x256xf32> to vector<34x256xf32>
    %40 = vector.extract_strided_slice %16 {offsets = [1, 0], sizes = [1, 256], strides = [1, 1]} : vector<9x256xf32> to vector<1x256xf32>
    %41 = vector.broadcast %40 : vector<1x256xf32> to vector<34x256xf32>
    %42 = arith.mulf %39, %41 : vector<34x256xf32>
    %43 = arith.addf %36, %42 : vector<34x256xf32>
    %44 = vector.extract_strided_slice %38 {offsets = [1, 0], sizes = [34, 256], strides = [1, 1]} : vector<36x256xf32> to vector<34x256xf32>
    %45 = vector.extract_strided_slice %16 {offsets = [4, 0], sizes = [1, 256], strides = [1, 1]} : vector<9x256xf32> to vector<1x256xf32>
    %46 = vector.broadcast %45 : vector<1x256xf32> to vector<34x256xf32>
    %47 = arith.mulf %44, %46 : vector<34x256xf32>
    %48 = arith.addf %43, %47 : vector<34x256xf32>
    %49 = vector.extract_strided_slice %38 {offsets = [2, 0], sizes = [34, 256], strides = [1, 1]} : vector<36x256xf32> to vector<34x256xf32>
    %50 = vector.extract_strided_slice %16 {offsets = [7, 0], sizes = [1, 256], strides = [1, 1]} : vector<9x256xf32> to vector<1x256xf32>
    %51 = vector.broadcast %50 : vector<1x256xf32> to vector<34x256xf32>
    %52 = arith.mulf %49, %51 : vector<34x256xf32>
    %53 = arith.addf %48, %52 : vector<34x256xf32>
    %54 = vector.extract_strided_slice %15 {offsets = [0, 2], sizes = [36, 32], strides = [1, 1]} : vector<36x34xf32> to vector<36x32xf32>
    %55 = tpu.concatenate %54, %54, %54, %54, %54, %54, %54, %54 in 1 : vector<36x32xf32>, vector<36x32xf32>, vector<36x32xf32>, vector<36x32xf32>, vector<36x32xf32>, vector<36x32xf32>, vector<36x32xf32>, vector<36x32xf32> -> vector<36x256xf32>
    %56 = vector.extract_strided_slice %55 {offsets = [0, 0], sizes = [34, 256], strides = [1, 1]} : vector<36x256xf32> to vector<34x256xf32>
    %57 = vector.extract_strided_slice %16 {offsets = [2, 0], sizes = [1, 256], strides = [1, 1]} : vector<9x256xf32> to vector<1x256xf32>
    %58 = vector.broadcast %57 : vector<1x256xf32> to vector<34x256xf32>
    %59 = arith.mulf %56, %58 : vector<34x256xf32>
    %60 = arith.addf %53, %59 : vector<34x256xf32>
    %61 = vector.extract_strided_slice %55 {offsets = [1, 0], sizes = [34, 256], strides = [1, 1]} : vector<36x256xf32> to vector<34x256xf32>
    %62 = vector.extract_strided_slice %16 {offsets = [5, 0], sizes = [1, 256], strides = [1, 1]} : vector<9x256xf32> to vector<1x256xf32>
    %63 = vector.broadcast %62 : vector<1x256xf32> to vector<34x256xf32>
    %64 = arith.mulf %61, %63 : vector<34x256xf32>
    %65 = arith.addf %60, %64 : vector<34x256xf32>
    %66 = vector.extract_strided_slice %55 {offsets = [2, 0], sizes = [34, 256], strides = [1, 1]} : vector<36x256xf32> to vector<34x256xf32>
    %67 = vector.extract_strided_slice %16 {offsets = [8, 0], sizes = [1, 256], strides = [1, 1]} : vector<9x256xf32> to vector<1x256xf32>
    %68 = vector.broadcast %67 : vector<1x256xf32> to vector<34x256xf32>
    %69 = arith.mulf %66, %68 : vector<34x256xf32>
    %70 = arith.addf %65, %69 : vector<34x256xf32>
    %cst_12 = arith.constant 0.000000e+00 : f32
    %71 = vector.broadcast %cst_12 : f32 to vector<34x256xf32>
    %72 = arith.maximumf %70, %71 : vector<34x256xf32>
    %73 = vector.extract_strided_slice %72 {offsets = [0, 1], sizes = [34, 255], strides = [1, 1]} : vector<34x256xf32> to vector<34x255xf32>
    %74 = vector.extract_strided_slice %72 {offsets = [0, 0], sizes = [34, 1], strides = [1, 1]} : vector<34x256xf32> to vector<34x1xf32>
    %75 = tpu.concatenate %73, %74 in 1 : vector<34x255xf32>, vector<34x1xf32> -> vector<34x256xf32>
    %76 = arith.maximumf %72, %75 : vector<34x256xf32>
    %77 = tpu.iota {dimensions = array<i32: 0>} : vector<256x128xi32>
    %78 = tpu.iota {dimensions = array<i32: 1>} : vector<256x128xi32>
    %c2_i32 = arith.constant 2 : i32
    %79 = vector.broadcast %c2_i32 : i32 to vector<256x128xi32>
    %80 = arith.muli %79, %78 : vector<256x128xi32>
    %81 = arith.cmpi eq, %77, %80 : vector<256x128xi32>
    %cst_13 = arith.constant 1.000000e+00 : f32
    %cst_14 = arith.constant 0.000000e+00 : f32
    %82 = vector.broadcast %cst_13 : f32 to vector<256x128xf32>
    %83 = vector.broadcast %cst_14 : f32 to vector<256x128xf32>
    %84 = arith.select %81, %82, %83 : vector<256x128xi1>, vector<256x128xf32>
    %cst_15 = arith.constant dense<0.000000e+00> : vector<34x128xf32>
    %85 = tpu.matmul %76, %84, %cst_15 {dimension_numbers = #tpu.dot_dimension_numbers<[1], [0], [0], [1], [0, 0, 1, 1], [], []>} : vector<34x256xf32>, vector<256x128xf32>, vector<34x128xf32> -> vector<34x128xf32>
    %86 = vector.extract_strided_slice %85 {offsets = [1, 0], sizes = [33, 128], strides = [1, 1]} : vector<34x128xf32> to vector<33x128xf32>
    %87 = vector.extract_strided_slice %85 {offsets = [0, 0], sizes = [1, 128], strides = [1, 1]} : vector<34x128xf32> to vector<1x128xf32>
    %88 = tpu.concatenate %86, %87 in 0 : vector<33x128xf32>, vector<1x128xf32> -> vector<34x128xf32>
    %89 = arith.maximumf %85, %88 : vector<34x128xf32>
    %90 = tpu.iota {dimensions = array<i32: 0>} : vector<16x34xi32>
    %91 = tpu.iota {dimensions = array<i32: 1>} : vector<16x34xi32>
    %c1_i32 = arith.constant 1 : i32
    %92 = vector.broadcast %c1_i32 : i32 to vector<16x34xi32>
    %93 = arith.andi %90, %92 : vector<16x34xi32>
    %c17_i32 = arith.constant 17 : i32
    %94 = vector.broadcast %c17_i32 : i32 to vector<16x34xi32>
    %95 = arith.muli %94, %93 : vector<16x34xi32>
    %96 = arith.addi %90, %95 : vector<16x34xi32>
    %97 = arith.cmpi eq, %91, %96 : vector<16x34xi32>
    %cst_16 = arith.constant 1.000000e+00 : f32
    %cst_17 = arith.constant 0.000000e+00 : f32
    %98 = vector.broadcast %cst_16 : f32 to vector<16x34xf32>
    %99 = vector.broadcast %cst_17 : f32 to vector<16x34xf32>
    %100 = arith.select %97, %98, %99 : vector<16x34xi1>, vector<16x34xf32>
    %cst_18 = arith.constant dense<0.000000e+00> : vector<16x128xf32>
    %101 = tpu.matmul %100, %89, %cst_18 {dimension_numbers = #tpu.dot_dimension_numbers<[1], [0], [0], [1], [0, 0, 1, 1], [], []>} : vector<16x34xf32>, vector<34x128xf32>, vector<16x128xf32> -> vector<16x128xf32>
    %102 = vector.extract_strided_slice %101 {offsets = [0, 0], sizes = [2, 128], strides = [1, 1]} : vector<16x128xf32> to vector<2x128xf32>
    %103 = vector.extract_strided_slice %101 {offsets = [2, 0], sizes = [2, 128], strides = [1, 1]} : vector<16x128xf32> to vector<2x128xf32>
    %104 = vector.extract_strided_slice %101 {offsets = [4, 0], sizes = [2, 128], strides = [1, 1]} : vector<16x128xf32> to vector<2x128xf32>
    %105 = vector.extract_strided_slice %101 {offsets = [6, 0], sizes = [2, 128], strides = [1, 1]} : vector<16x128xf32> to vector<2x128xf32>
    %106 = vector.extract_strided_slice %101 {offsets = [8, 0], sizes = [2, 128], strides = [1, 1]} : vector<16x128xf32> to vector<2x128xf32>
    %107 = vector.extract_strided_slice %101 {offsets = [10, 0], sizes = [2, 128], strides = [1, 1]} : vector<16x128xf32> to vector<2x128xf32>
    %108 = vector.extract_strided_slice %101 {offsets = [12, 0], sizes = [2, 128], strides = [1, 1]} : vector<16x128xf32> to vector<2x128xf32>
    %109 = vector.extract_strided_slice %101 {offsets = [14, 0], sizes = [2, 128], strides = [1, 1]} : vector<16x128xf32> to vector<2x128xf32>
    %110 = tpu.concatenate %102, %103, %104, %105, %106, %107, %108, %109 in 1 : vector<2x128xf32>, vector<2x128xf32>, vector<2x128xf32>, vector<2x128xf32>, vector<2x128xf32>, vector<2x128xf32>, vector<2x128xf32>, vector<2x128xf32> -> vector<2x1024xf32>
    tpu.wait_dma2 semaphore(%arg9 : memref<!tpu.dma_semaphore, #tpu.memory_space<semaphore_mem>>) src(%arg6 : memref<1024x64xf32, #tpu.memory_space<any>>) dst(%arg8 : memref<1024x64xf32, #tpu.memory_space<vmem>>)
    %c0_19 = arith.constant 0 : index
    %c0_20 = arith.constant 0 : index
    %111 = vector.load %arg8[%c0_19, %c0_20] : memref<1024x64xf32, #tpu.memory_space<vmem>>, vector<1024x64xf32>
    %cst_21 = arith.constant dense<0.000000e+00> : vector<2x64xf32>
    %112 = tpu.matmul %110, %111, %cst_21 {dimension_numbers = #tpu.dot_dimension_numbers<[1], [0], [0], [1], [0, 0, 1, 1], [], []>} : vector<2x1024xf32>, vector<1024x64xf32>, vector<2x64xf32> -> vector<2x64xf32>
    %c0_22 = arith.constant 0 : index
    %c0_23 = arith.constant 0 : index
    %113 = vector.load %arg5[%c0_22, %c0_23] : memref<1x64xf32, #tpu.memory_space<vmem>>, vector<1x64xf32>
    %114 = vector.broadcast %113 : vector<1x64xf32> to vector<2x64xf32>
    %115 = arith.addf %112, %114 : vector<2x64xf32>
    %c0_24 = arith.constant 0 : index
    %c0_25 = arith.constant 0 : index
    %116 = vector.load %arg7[%c0_24, %c0_25] : memref<2x64xf32, #tpu.memory_space<vmem>>, vector<2x64xf32>
    tpu.vector_store %arg7[%c0_24, %c0_25], %115 {strides = array<i32>} : memref<2x64xf32, #tpu.memory_space<vmem>>, vector<2x64xf32>,
    return
  }
  func.func @transform_0(%arg0: i32) -> (i32, i32) {
    %c0_i32 = arith.constant 0 : i32
    %c0_i32_0 = arith.constant 0 : i32
    %c0_i32_1 = arith.constant 0 : i32
    return %c0_i32, %c0_i32_0 : i32, i32
  }
  func.func @transform_1(%arg0: i32) -> (i32, i32) {
    %c0_i32 = arith.constant 0 : i32
    %c0_i32_0 = arith.constant 0 : i32
    %c0_i32_1 = arith.constant 0 : i32
    return %c0_i32, %c0_i32_0 : i32, i32
  }
  func.func @transform_2(%arg0: i32) -> (i32, i32) {
    %c0_i32 = arith.constant 0 : i32
    %c0_i32_0 = arith.constant 0 : i32
    %c0_i32_1 = arith.constant 0 : i32
    return %c0_i32, %c0_i32_0 : i32, i32
  }
  func.func @transform_3(%arg0: i32) -> (i32, i32) {
    %c0_i32 = arith.constant 0 : i32
    %c0_i32_0 = arith.constant 0 : i32
    %c0_i32_1 = arith.constant 0 : i32
    return %c0_i32, %c0_i32_0 : i32, i32
  }
  func.func @transform_4(%arg0: i32) -> (i32, i32) {
    %c0_i32 = arith.constant 0 : i32
    %c0_i32_0 = arith.constant 0 : i32
    %c0_i32_1 = arith.constant 0 : i32
    return %c0_i32, %c0_i32_0 : i32, i32
  }
  func.func @transform_6(%arg0: i32) -> (i32, i32) {
    %c0_i32 = arith.constant 0 : i32
    %c0_i32_0 = arith.constant 0 : i32
    %c0_i32_1 = arith.constant 0 : i32
    return %c0_i32, %c0_i32_0 : i32, i32
  }
}

</mosaic_0001>

<llo_original>
// kernel: source_image_encoder.1
$region0: #{source_image_encoder.1}
  #allocation0 [shape = 'u32[]', space=smem, size = 0x4, offset = 0x4, fixed_abs, tag = 'smem constant byte address 0x4 - core index']
  #allocation1 [shape = 'u32[144,128]{1,0:T(1,128)}', space=vmem, size = 0x12000, scoped, tag = 'internal scratch']
  #allocation2 [shape = 'f32[1024,64]{1,0:T(8,128)}', space=vmem, size = 0x80000, scoped, tag = 'scratch operand']
  #allocation3 [shape = 's32[1]{0}', space=sflag, size = 0x4, scoped, tag = 'scratch operand']
  #allocation6 [shape = 's32[]', space=sflag, size = 0x4, offset = 0, fixed_abs, tag = 'sflag constant byte address 0x0 - dummy sync flag']
  %s0 = inlined_call_operand.vmem [shape: s32[32,1], index: 0, kind: input, shape index: {}]
  %s1 = inlined_call_operand.vmem [shape: f32[50,32], index: 1, kind: input, shape index: {}]
  %s2 = inlined_call_operand.vmem [shape: f32[9,256], index: 2, kind: input, shape index: {}]
  %s3 = inlined_call_operand.vmem [shape: f32[1,256], index: 3, kind: input, shape index: {}]
  %s4 = inlined_call_operand.vmem [shape: f32[1,64], index: 4, kind: input, shape index: {}]
  %s5 = inlined_call_operand.vmem [shape: f32[1024,64], index: 5, kind: input, shape index: {}]
  %s6 = inlined_call_operand.hbm [shape: f32[2,64], index: 6, kind: output, shape index: {}]
  %s7 = sld [smem:[#allocation0]]
  $region64: #{source_image_encoder.1} parent=0
    _
  %s9 = ssub.s32 1, %s7
  %s10 = scalar_select 0, %s9, %s7
  $region1: #{source_image_encoder.1} parent=0
    #allocation4 [shape = 'u8[1024]{0}', space=vmem, size = 0x400, scoped, tag = 'output window, operand 0, single buffered']
    #allocation5 [shape = 's32[1]{0}', space=sflag, size = 0x4, scoped, tag = 'scoped memory for source_image_encoder.1']
    %11 = vsyncpa [#allocation5], 0
    // Predicated region
    $region2: #{source_image_encoder.1} parent=1 // pred_check
      _
    $region3: #{source_image_encoder.1} parent=1 // pred_check_branch
      %13 = sbr.rel (0) target = $region5
    $region4: #{source_image_encoder.1} parent=1 // pred_region
      _
    $region5: #{source_image_encoder.1} parent=1 // pred_fallthru
      _
    // Predicated region
    $region6: #{source_image_encoder.1} parent=1 // pred_check
      _
    $region7: #{source_image_encoder.1} parent=1 // pred_check_branch
      %15 = sbr.rel (0) target = $region9
    $region8: #{source_image_encoder.1} parent=1 // pred_region
      _
    $region9: #{source_image_encoder.1} parent=1 // pred_fallthru
      _
    // Predicated region
    $region10: #{source_image_encoder.1} parent=1 // pred_check
      _
    $region11: #{source_image_encoder.1} parent=1 // pred_check_branch
      %17 = sbr.rel (0) target = $region13
    $region12: #{source_image_encoder.1} parent=1 // pred_region
      _
    $region13: #{source_image_encoder.1} parent=1 // pred_fallthru
      _
    // Predicated region
    $region14: #{source_image_encoder.1} parent=1 // pred_check
      _
    $region15: #{source_image_encoder.1} parent=1 // pred_check_branch
      %19 = sbr.rel (0) target = $region17
    $region16: #{source_image_encoder.1} parent=1 // pred_region
      _
    $region17: #{source_image_encoder.1} parent=1 // pred_fallthru
      _
    // Predicated region
    $region18: #{source_image_encoder.1} parent=1 // pred_check
      _
    $region19: #{source_image_encoder.1} parent=1 // pred_check_branch
      %21 = sbr.rel (0) target = $region21
    $region20: #{source_image_encoder.1} parent=1 // pred_region
      _
    $region21: #{source_image_encoder.1} parent=1 // pred_fallthru
      _
    %p23 = scmp.lt.u32.totalorder 1024, 8
    %p24 = pneg %p23
    // Predicated region
    $region22: #{source_image_encoder.1} parent=1 // pred_check
      _
    $region23: #{source_image_encoder.1} parent=1 // pred_check_branch
      %26 = sbr.rel (%p23) target = $region25
    $region24: #{source_image_encoder.1} parent=1 // pred_region
      %s41 = sand.u32 1024, 7
      %p42 = scmp.eq.s32.totalorder %s41, 0
      // Predicated region
      $region37: #{source_image_encoder.1} parent=24 // pred_check
        %p43 = pneg %p42
      $region38: #{source_image_encoder.1} parent=24 // pred_check_branch
        %45 = sbr.rel (%p43) target = $region40
      $region39: #{source_image_encoder.1} parent=24 // pred_region
        loop: start=0, step=1, limit=1
        $region41: #{source_image_encoder.1} parent=39 // loop_pre_header
          _
        $region42: #{source_image_encoder.1} parent=39 // loop_header
          %s47 = sphi 0, %s51
          %p48 = scmp.ge.s32.totalorder %s47, 1
          %s52 = sphi %s5, %s5
          %s53 = sphi [#allocation2], [#allocation2]
        $region43: #{source_image_encoder.1} parent=39 // loop_header_branch
          %50 = sbr.rel (%p48) target = $region47
        $region44: #{source_image_encoder.1} parent=39 // loop_body
          %v54 = vld [vmem:[%s52] sm:$0xff]
          %55 = vst [vmem:[%s53] sm:$0xff] %v54
          %v56 = vld [vmem:[%s52 + $0x8] sm:$0xff]
          %57 = vst [vmem:[%s53 + $0x8] sm:$0xff] %v56
          %v58 = vld [vmem:[%s52 + $0x10] sm:$0xff]
          %59 = vst [vmem:[%s53 + $0x10] sm:$0xff] %v58
          %v60 = vld [vmem:[%s52 + $0x18] sm:$0xff]
          %61 = vst [vmem:[%s53 + $0x18] sm:$0xff] %v60
          %v62 = vld [vmem:[%s52 + $0x20] sm:$0xff]
          %63 = vst [vmem:[%s53 + $0x20] sm:$0xff] %v62
          %v64 = vld [vmem:[%s52 + $0x28] sm:$0xff]
          %65 = vst [vmem:[%s53 + $0x28] sm:$0xff] %v64
          %v66 = vld [vmem:[%s52 + $0x30] sm:$0xff]
          %67 = vst [vmem:[%s53 + $0x30] sm:$0xff] %v66
          %v68 = vld [vmem:[%s52 + $0x38] sm:$0xff]
          %69 = vst [vmem:[%s53 + $0x38] sm:$0xff] %v68
          %v70 = vld [vmem:[%s52 + $0x40] sm:$0xff]
          %71 = vst [vmem:[%s53 + $0x40] sm:$0xff] %v70
          %v72 = vld [vmem:[%s52 + $0x48] sm:$0xff]
          %73 = vst [vmem:[%s53 + $0x48] sm:$0xff] %v72
          %v74 = vld [vmem:[%s52 + $0x50] sm:$0xff]
          %75 = vst [vmem:[%s53 + $0x50] sm:$0xff] %v74
          %v76 = vld [vmem:[%s52 + $0x58] sm:$0xff]
          %77 = vst [vmem:[%s53 + $0x58] sm:$0xff] %v76
          %v78 = vld [vmem:[%s52 + $0x60] sm:$0xff]
          %79 = vst [vmem:[%s53 + $0x60] sm:$0xff] %v78
          %v80 = vld [vmem:[%s52 + $0x68] sm:$0xff]
          %81 = vst [vmem:[%s53 + $0x68] sm:$0xff] %v80
          %v82 = vld [vmem:[%s52 + $0x70] sm:$0xff]
          %83 = vst [vmem:[%s53 + $0x70] sm:$0xff] %v82
          %v84 = vld [vmem:[%s52 + $0x78] sm:$0xff]
          %85 = vst [vmem:[%s53 + $0x78] sm:$0xff] %v84
          %v86 = vld [vmem:[%s52 + $0x80] sm:$0xff]
          %87 = vst [vmem:[%s53 + $0x80] sm:$0xff] %v86
          %v88 = vld [vmem:[%s52 + $0x88] sm:$0xff]
          %89 = vst [vmem:[%s53 + $0x88] sm:$0xff] %v88
          %v90 = vld [vmem:[%s52 + $0x90] sm:$0xff]
          %91 = vst [vmem:[%s53 + $0x90] sm:$0xff] %v90
          %v92 = vld [vmem:[%s52 + $0x98] sm:$0xff]
          %93 = vst [vmem:[%s53 + $0x98] sm:$0xff] %v92
          %v94 = vld [vmem:[%s52 + $0xa0] sm:$0xff]
          %95 = vst [vmem:[%s53 + $0xa0] sm:$0xff] %v94
          %v96 = vld [vmem:[%s52 + $0xa8] sm:$0xff]
          %97 = vst [vmem:[%s53 + $0xa8] sm:$0xff] %v96
          %v98 = vld [vmem:[%s52 + $0xb0] sm:$0xff]
          %99 = vst [vmem:[%s53 + $0xb0] sm:$0xff] %v98
          %v100 = vld [vmem:[%s52 + $0xb8] sm:$0xff]
          %101 = vst [vmem:[%s53 + $0xb8] sm:$0xff] %v100
          %v102 = vld [vmem:[%s52 + $0xc0] sm:$0xff]
          %103 = vst [vmem:[%s53 + $0xc0] sm:$0xff] %v102
          %v104 = vld [vmem:[%s52 + $0xc8] sm:$0xff]
          %105 = vst [vmem:[%s53 + $0xc8] sm:$0xff] %v104
          %v106 = vld [vmem:[%s52 + $0xd0] sm:$0xff]
          %107 = vst [vmem:[%s53 + $0xd0] sm:$0xff] %v106
          %v108 = vld [vmem:[%s52 + $0xd8] sm:$0xff]
          %109 = vst [vmem:[%s53 + $0xd8] sm:$0xff] %v108
          %v110 = vld [vmem:[%s52 + $0xe0] sm:$0xff]
          %111 = vst [vmem:[%s53 + $0xe0] sm:$0xff] %v110
          %v112 = vld [vmem:[%s52 + $0xe8] sm:$0xff]
          %113 = vst [vmem:[%s53 + $0xe8] sm:$0xff] %v112
          %v114 = vld [vmem:[%s52 + $0xf0] sm:$0xff]
          %115 = vst [vmem:[%s53 + $0xf0] sm:$0xff] %v114
          %v116 = vld [vmem:[%s52 + $0xf8] sm:$0xff]
          %117 = vst [vmem:[%s53 + $0xf8] sm:$0xff] %v116
          %v118 = vld [vmem:[%s52 + $0x100] sm:$0xff]
          %119 = vst [vmem:[%s53 + $0x100] sm:$0xff] %v118
          %v120 = vld [vmem:[%s52 + $0x108] sm:$0xff]
          %121 = vst [vmem:[%s53 + $0x108] sm:$0xff] %v120
          %v122 = vld [vmem:[%s52 + $0x110] sm:$0xff]
          %123 = vst [vmem:[%s53 + $0x110] sm:$0xff] %v122
          %v124 = vld [vmem:[%s52 + $0x118] sm:$0xff]
          %125 = vst [vmem:[%s53 + $0x118] sm:$0xff] %v124
          %v126 = vld [vmem:[%s52 + $0x120] sm:$0xff]
          %127 = vst [vmem:[%s53 + $0x120] sm:$0xff] %v126
          %v128 = vld [vmem:[%s52 + $0x128] sm:$0xff]
          %129 = vst [vmem:[%s53 + $0x128] sm:$0xff] %v128
          %v130 = vld [vmem:[%s52 + $0x130] sm:$0xff]
          %131 = vst [vmem:[%s53 + $0x130] sm:$0xff] %v130
          %v132 = vld [vmem:[%s52 + $0x138] sm:$0xff]
          %133 = vst [vmem:[%s53 + $0x138] sm:$0xff] %v132
          %v134 = vld [vmem:[%s52 + $0x140] sm:$0xff]
          %135 = vst [vmem:[%s53 + $0x140] sm:$0xff] %v134
          %v136 = vld [vmem:[%s52 + $0x148] sm:$0xff]
          %137 = vst [vmem:[%s53 + $0x148] sm:$0xff] %v136
          %v138 = vld [vmem:[%s52 + $0x150] sm:$0xff]
          %139 = vst [vmem:[%s53 + $0x150] sm:$0xff] %v138
          %v140 = vld [vmem:[%s52 + $0x158] sm:$0xff]
          %141 = vst [vmem:[%s53 + $0x158] sm:$0xff] %v140
          %v142 = vld [vmem:[%s52 + $0x160] sm:$0xff]
          %143 = vst [vmem:[%s53 + $0x160] sm:$0xff] %v142
          %v144 = vld [vmem:[%s52 + $0x168] sm:$0xff]
          %145 = vst [vmem:[%s53 + $0x168] sm:$0xff] %v144
          %v146 = vld [vmem:[%s52 + $0x170] sm:$0xff]
          %147 = vst [vmem:[%s53 + $0x170] sm:$0xff] %v146
          %v148 = vld [vmem:[%s52 + $0x178] sm:$0xff]
          %149 = vst [vmem:[%s53 + $0x178] sm:$0xff] %v148
          %v150 = vld [vmem:[%s52 + $0x180] sm:$0xff]
          %151 = vst [vmem:[%s53 + $0x180] sm:$0xff] %v150
          %v152 = vld [vmem:[%s52 + $0x188] sm:$0xff]
          %153 = vst [vmem:[%s53 + $0x188] sm:$0xff] %v152
          %v154 = vld [vmem:[%s52 + $0x190] sm:$0xff]
          %155 = vst [vmem:[%s53 + $0x190] sm:$0xff] %v154
          %v156 = vld [vmem:[%s52 + $0x198] sm:$0xff]
          %157 = vst [vmem:[%s53 + $0x198] sm:$0xff] %v156
          %v158 = vld [vmem:[%s52 + $0x1a0] sm:$0xff]
          %159 = vst [vmem:[%s53 + $0x1a0] sm:$0xff] %v158
          %v160 = vld [vmem:[%s52 + $0x1a8] sm:$0xff]
          %161 = vst [vmem:[%s53 + $0x1a8] sm:$0xff] %v160
          %v162 = vld [vmem:[%s52 + $0x1b0] sm:$0xff]
          %163 = vst [vmem:[%s53 + $0x1b0] sm:$0xff] %v162
          %v164 = vld [vmem:[%s52 + $0x1b8] sm:$0xff]
          %165 = vst [vmem:[%s53 + $0x1b8] sm:$0xff] %v164
          %v166 = vld [vmem:[%s52 + $0x1c0] sm:$0xff]
          %167 = vst [vmem:[%s53 + $0x1c0] sm:$0xff] %v166
          %v168 = vld [vmem:[%s52 + $0x1c8] sm:$0xff]
          %169 = vst [vmem:[%s53 + $0x1c8] sm:$0xff] %v168
          %v170 = vld [vmem:[%s52 + $0x1d0] sm:$0xff]
          %171 = vst [vmem:[%s53 + $0x1d0] sm:$0xff] %v170
          %v172 = vld [vmem:[%s52 + $0x1d8] sm:$0xff]
          %173 = vst [vmem:[%s53 + $0x1d8] sm:$0xff] %v172
          %v174 = vld [vmem:[%s52 + $0x1e0] sm:$0xff]
          %175 = vst [vmem:[%s53 + $0x1e0] sm:$0xff] %v174
          %v176 = vld [vmem:[%s52 + $0x1e8] sm:$0xff]
          %177 = vst [vmem:[%s53 + $0x1e8] sm:$0xff] %v176
          %v178 = vld [vmem:[%s52 + $0x1f0] sm:$0xff]
          %179 = vst [vmem:[%s53 + $0x1f0] sm:$0xff] %v178
          %v180 = vld [vmem:[%s52 + $0x1f8] sm:$0xff]
          %181 = vst [vmem:[%s53 + $0x1f8] sm:$0xff] %v180
          %v182 = vld [vmem:[%s52 + $0x200] sm:$0xff]
          %183 = vst [vmem:[%s53 + $0x200] sm:$0xff] %v182
          %v184 = vld [vmem:[%s52 + $0x208] sm:$0xff]
          %185 = vst [vmem:[%s53 + $0x208] sm:$0xff] %v184
          %v186 = vld [vmem:[%s52 + $0x210] sm:$0xff]
          %187 = vst [vmem:[%s53 + $0x210] sm:$0xff] %v186
          %v188 = vld [vmem:[%s52 + $0x218] sm:$0xff]
          %189 = vst [vmem:[%s53 + $0x218] sm:$0xff] %v188
          %v190 = vld [vmem:[%s52 + $0x220] sm:$0xff]
          %191 = vst [vmem:[%s53 + $0x220] sm:$0xff] %v190
          %v192 = vld [vmem:[%s52 + $0x228] sm:$0xff]
          %193 = vst [vmem:[%s53 + $0x228] sm:$0xff] %v192
          %v194 = vld [vmem:[%s52 + $0x230] sm:$0xff]
          %195 = vst [vmem:[%s53 + $0x230] sm:$0xff] %v194
          %v196 = vld [vmem:[%s52 + $0x238] sm:$0xff]
          %197 = vst [vmem:[%s53 + $0x238] sm:$0xff] %v196
          %v198 = vld [vmem:[%s52 + $0x240] sm:$0xff]
          %199 = vst [vmem:[%s53 + $0x240] sm:$0xff] %v198
          %v200 = vld [vmem:[%s52 + $0x248] sm:$0xff]
          %201 = vst [vmem:[%s53 + $0x248] sm:$0xff] %v200
          %v202 = vld [vmem:[%s52 + $0x250] sm:$0xff]
          %203 = vst [vmem:[%s53 + $0x250] sm:$0xff] %v202
          %v204 = vld [vmem:[%s52 + $0x258] sm:$0xff]
          %205 = vst [vmem:[%s53 + $0x258] sm:$0xff] %v204
          %v206 = vld [vmem:[%s52 + $0x260] sm:$0xff]
          %207 = vst [vmem:[%s53 + $0x260] sm:$0xff] %v206
          %v208 = vld [vmem:[%s52 + $0x268] sm:$0xff]
          %209 = vst [vmem:[%s53 + $0x268] sm:$0xff] %v208
          %v210 = vld [vmem:[%s52 + $0x270] sm:$0xff]
          %211 = vst [vmem:[%s53 + $0x270] sm:$0xff] %v210
          %v212 = vld [vmem:[%s52 + $0x278] sm:$0xff]
          %213 = vst [vmem:[%s53 + $0x278] sm:$0xff] %v212
          %v214 = vld [vmem:[%s52 + $0x280] sm:$0xff]
          %215 = vst [vmem:[%s53 + $0x280] sm:$0xff] %v214
          %v216 = vld [vmem:[%s52 + $0x288] sm:$0xff]
          %217 = vst [vmem:[%s53 + $0x288] sm:$0xff] %v216
          %v218 = vld [vmem:[%s52 + $0x290] sm:$0xff]
          %219 = vst [vmem:[%s53 + $0x290] sm:$0xff] %v218
          %v220 = vld [vmem:[%s52 + $0x298] sm:$0xff]
          %221 = vst [vmem:[%s53 + $0x298] sm:$0xff] %v220
          %v222 = vld [vmem:[%s52 + $0x2a0] sm:$0xff]
          %223 = vst [vmem:[%s53 + $0x2a0] sm:$0xff] %v222
          %v224 = vld [vmem:[%s52 + $0x2a8] sm:$0xff]
          %225 = vst [vmem:[%s53 + $0x2a8] sm:$0xff] %v224
          %v226 = vld [vmem:[%s52 + $0x2b0] sm:$0xff]
          %227 = vst [vmem:[%s53 + $0x2b0] sm:$0xff] %v226
          %v228 = vld [vmem:[%s52 + $0x2b8] sm:$0xff]
          %229 = vst [vmem:[%s53 + $0x2b8] sm:$0xff] %v228
          %v230 = vld [vmem:[%s52 + $0x2c0] sm:$0xff]
          %231 = vst [vmem:[%s53 + $0x2c0] sm:$0xff] %v230
          %v232 = vld [vmem:[%s52 + $0x2c8] sm:$0xff]
          %233 = vst [vmem:[%s53 + $0x2c8] sm:$0xff] %v232
          %v234 = vld [vmem:[%s52 + $0x2d0] sm:$0xff]
          %235 = vst [vmem:[%s53 + $0x2d0] sm:$0xff] %v234
          %v236 = vld [vmem:[%s52 + $0x2d8] sm:$0xff]
          %237 = vst [vmem:[%s53 + $0x2d8] sm:$0xff] %v236
          %v238 = vld [vmem:[%s52 + $0x2e0] sm:$0xff]
          %239 = vst [vmem:[%s53 + $0x2e0] sm:$0xff] %v238
          %v240 = vld [vmem:[%s52 + $0x2e8] sm:$0xff]
          %241 = vst [vmem:[%s53 + $0x2e8] sm:$0xff] %v240
          %v242 = vld [vmem:[%s52 + $0x2f0] sm:$0xff]
          %243 = vst [vmem:[%s53 + $0x2f0] sm:$0xff] %v242
          %v244 = vld [vmem:[%s52 + $0x2f8] sm:$0xff]
          %245 = vst [vmem:[%s53 + $0x2f8] sm:$0xff] %v244
          %v246 = vld [vmem:[%s52 + $0x300] sm:$0xff]
          %247 = vst [vmem:[%s53 + $0x300] sm:$0xff] %v246
          %v248 = vld [vmem:[%s52 + $0x308] sm:$0xff]
          %249 = vst [vmem:[%s53 + $0x308] sm:$0xff] %v248
          %v250 = vld [vmem:[%s52 + $0x310] sm:$0xff]
          %251 = vst [vmem:[%s53 + $0x310] sm:$0xff] %v250
          %v252 = vld [vmem:[%s52 + $0x318] sm:$0xff]
          %253 = vst [vmem:[%s53 + $0x318] sm:$0xff] %v252
          %v254 = vld [vmem:[%s52 + $0x320] sm:$0xff]
          %255 = vst [vmem:[%s53 + $0x320] sm:$0xff] %v254
          %v256 = vld [vmem:[%s52 + $0x328] sm:$0xff]
          %257 = vst [vmem:[%s53 + $0x328] sm:$0xff] %v256
          %v258 = vld [vmem:[%s52 + $0x330] sm:$0xff]
          %259 = vst [vmem:[%s53 + $0x330] sm:$0xff] %v258
          %v260 = vld [vmem:[%s52 + $0x338] sm:$0xff]
          %261 = vst [vmem:[%s53 + $0x338] sm:$0xff] %v260
          %v262 = vld [vmem:[%s52 + $0x340] sm:$0xff]
          %263 = vst [vmem:[%s53 + $0x340] sm:$0xff] %v262
          %v264 = vld [vmem:[%s52 + $0x348] sm:$0xff]
          %265 = vst [vmem:[%s53 + $0x348] sm:$0xff] %v264
          %v266 = vld [vmem:[%s52 + $0x350] sm:$0xff]
          %267 = vst [vmem:[%s53 + $0x350] sm:$0xff] %v266
          %v268 = vld [vmem:[%s52 + $0x358] sm:$0xff]
          %269 = vst [vmem:[%s53 + $0x358] sm:$0xff] %v268
          %v270 = vld [vmem:[%s52 + $0x360] sm:$0xff]
          %271 = vst [vmem:[%s53 + $0x360] sm:$0xff] %v270
          %v272 = vld [vmem:[%s52 + $0x368] sm:$0xff]
          %273 = vst [vmem:[%s53 + $0x368] sm:$0xff] %v272
          %v274 = vld [vmem:[%s52 + $0x370] sm:$0xff]
          %275 = vst [vmem:[%s53 + $0x370] sm:$0xff] %v274
          %v276 = vld [vmem:[%s52 + $0x378] sm:$0xff]
          %277 = vst [vmem:[%s53 + $0x378] sm:$0xff] %v276
          %v278 = vld [vmem:[%s52 + $0x380] sm:$0xff]
          %279 = vst [vmem:[%s53 + $0x380] sm:$0xff] %v278
          %v280 = vld [vmem:[%s52 + $0x388] sm:$0xff]
          %281 = vst [vmem:[%s53 + $0x388] sm:$0xff] %v280
          %v282 = vld [vmem:[%s52 + $0x390] sm:$0xff]
          %283 = vst [vmem:[%s53 + $0x390] sm:$0xff] %v282
          %v284 = vld [vmem:[%s52 + $0x398] sm:$0xff]
          %285 = vst [vmem:[%s53 + $0x398] sm:$0xff] %v284
          %v286 = vld [vmem:[%s52 + $0x3a0] sm:$0xff]
          %287 = vst [vmem:[%s53 + $0x3a0] sm:$0xff] %v286
          %v288 = vld [vmem:[%s52 + $0x3a8] sm:$0xff]
          %289 = vst [vmem:[%s53 + $0x3a8] sm:$0xff] %v288
          %v290 = vld [vmem:[%s52 + $0x3b0] sm:$0xff]
          %291 = vst [vmem:[%s53 + $0x3b0] sm:$0xff] %v290
          %v292 = vld [vmem:[%s52 + $0x3b8] sm:$0xff]
          %293 = vst [vmem:[%s53 + $0x3b8] sm:$0xff] %v292
          %v294 = vld [vmem:[%s52 + $0x3c0] sm:$0xff]
          %295 = vst [vmem:[%s53 + $0x3c0] sm:$0xff] %v294
          %v296 = vld [vmem:[%s52 + $0x3c8] sm:$0xff]
          %297 = vst [vmem:[%s53 + $0x3c8] sm:$0xff] %v296
          %v298 = vld [vmem:[%s52 + $0x3d0] sm:$0xff]
          %299 = vst [vmem:[%s53 + $0x3d0] sm:$0xff] %v298
          %v300 = vld [vmem:[%s52 + $0x3d8] sm:$0xff]
          %301 = vst [vmem:[%s53 + $0x3d8] sm:$0xff] %v300
          %v302 = vld [vmem:[%s52 + $0x3e0] sm:$0xff]
          %303 = vst [vmem:[%s53 + $0x3e0] sm:$0xff] %v302
          %v304 = vld [vmem:[%s52 + $0x3e8] sm:$0xff]
          %305 = vst [vmem:[%s53 + $0x3e8] sm:$0xff] %v304
          %v306 = vld [vmem:[%s52 + $0x3f0] sm:$0xff]
          %307 = vst [vmem:[%s53 + $0x3f0] sm:$0xff] %v306
          %v308 = vld [vmem:[%s52 + $0x3f8] sm:$0xff]
          %309 = vst [vmem:[%s53 + $0x3f8] sm:$0xff] %v308
        $region45: #{source_image_encoder.1} parent=39 // loop_footer
          %s51 = sadd.s32 1, %s47
        $region46: #{source_image_encoder.1} parent=39 // loop_footer_branch
          %46 = sbr.rel target = $region42
        $region47: #{source_image_encoder.1} parent=39 // loop_exit
          _
      $region40: #{source_image_encoder.1} parent=24 // pred_fallthru
        _
      %p310 = pneg %p42
      // Predicated region
      $region48: #{source_image_encoder.1} parent=24 // pred_check
        _
      $region49: #{source_image_encoder.1} parent=24 // pred_check_branch
        %312 = sbr.rel (%p42) target = $region51
      $region50: #{source_image_encoder.1} parent=24 // pred_region
        %s313 = sand.u32 1024, 7
      $region51: #{source_image_encoder.1} parent=24 // pred_fallthru
        _
    $region25: #{source_image_encoder.1} parent=1 // pred_fallthru
      _
    // Predicated region
    $region26: #{source_image_encoder.1} parent=1 // pred_check
      %p27 = pneg %p23
    $region27: #{source_image_encoder.1} parent=1 // pred_check_branch
      %29 = sbr.rel (%p27) target = $region29
    $region28: #{source_image_encoder.1} parent=1 // pred_region
      %s30 = sshllo.u32 0, 1024
      loop: start=0, step=1, limit=1
      $region30: #{source_image_encoder.1} parent=28 // loop_pre_header
        _
      $region31: #{source_image_encoder.1} parent=28 // loop_header
        %s32 = sphi 0, %s36
        %p33 = scmp.ge.s32.totalorder %s32, 1
        %s37 = sphi %s5, %s5
        %s38 = sphi [#allocation2], [#allocation2]
      $region32: #{source_image_encoder.1} parent=28 // loop_header_branch
        %35 = sbr.rel (%p33) target = $region36
      $region33: #{source_image_encoder.1} parent=28 // loop_body
        %v39 = vld [vmem:[%s37] sm:%s30]
        %40 = vst [vmem:[%s38] sm:%s30] %v39
      $region34: #{source_image_encoder.1} parent=28 // loop_footer
        %s36 = sadd.s32 1, %s32
      $region35: #{source_image_encoder.1} parent=28 // loop_footer_branch
        %31 = sbr.rel target = $region31
      $region36: #{source_image_encoder.1} parent=28 // loop_exit
        _
    $region29: #{source_image_encoder.1} parent=1 // pred_fallthru
      _
    // Predicated region
    $region52: #{source_image_encoder.1} parent=1 // pred_check
      _
    $region53: #{source_image_encoder.1} parent=1 // pred_check_branch
      %316 = sbr.rel (0) target = $region55
    $region54: #{source_image_encoder.1} parent=1 // pred_region
      %317 = vsyncadd [#allocation3], 16384
    $region55: #{source_image_encoder.1} parent=1 // pred_fallthru
      _
    %v318 = vld [vmem:[%s0] sm:$0xff]
    %v319 = vld [vmem:[%s0 + $0x8] sm:$0xff]
    %v320 = vld [vmem:[%s0 + $0x10] sm:$0xff]
    %v321 = vld [vmem:[%s0 + $0x18] sm:$0xff]
    %v322 = vlaneseq
    %v323 = vand.u32 %v322, 127
    %324 = vset.pattern.permute.xlu0 0
    %325 = vperm.xlu0 %324, %v318
    %v326 = vpop.permute.xlu0 %325
    %327 = vset.pattern.permute.xlu0 0
    %328 = vperm.xlu0 %327, %v319
    %v329 = vpop.permute.xlu0 %328
    %330 = vset.pattern.permute.xlu0 0
    %331 = vperm.xlu0 %330, %v320
    %v332 = vpop.permute.xlu0 %331
    %333 = vset.pattern.permute.xlu0 0
    %334 = vperm.xlu0 %333, %v321
    %v335 = vpop.permute.xlu0 %334
    %vm336 = vcmp.eq.s32.totalorder %v326, %v323
    %vm337 = vcmp.eq.s32.totalorder %v329, %v323
    %vm338 = vcmp.eq.s32.totalorder %v332, %v323
    %vm339 = vcmp.eq.s32.totalorder %v335, %v323
    %v340 = vsel %vm336, 1.0, 0.0
    %v341 = vsel %vm337, 1.0, 0.0
    %v342 = vsel %vm338, 1.0, 0.0
    %v343 = vsel %vm339, 1.0, 0.0
    %v344 = vld [vmem:[%s1] sm:$0xff]
    %v345 = vld [vmem:[%s1 + $0x8] sm:$0xff]
    %v346 = vld [vmem:[%s1 + $0x10] sm:$0xff]
    %v347 = vld [vmem:[%s1 + $0x18] sm:$0xff]
    %v348 = vld [vmem:[%s1 + $0x20] sm:$0xff]
    %v349 = vld [vmem:[%s1 + $0x28] sm:$0xff]
    %v350 = vld [vmem:[%s1 + $0x30] sm:$0x3]
    %vm351 = vcmask 408576
    %v353 = vsel %vm351, %v340, 0
    %v356 = vsel %vm351, %v341, 0
    %v359 = vsel %vm351, %v342, 0
    %v362 = vsel %vm351, %v343, 0
    %vm364 = vcmask 1041408
    %v366 = vsel %vm364, %v350, 0
    %368 = vmatprep.subr.mxu0 0.0
    %369 = vmatpush1.msra.mxu0 %v344
    %370 = vmatprep.subr.mxu0 0.0
    %371 = vmatpush1.msra.mxu0 %v345
    %372 = vmatprep.subr.mxu0 0.0
    %373 = vmatpush1.msra.mxu0 %v346
    %374 = vmatprep.subr.mxu0 0.0
    %375 = vmatpush1.msra.mxu0 %v347
    %376 = vmatprep.subr.mxu0 0.0
    %377 = vmatpush1.msra.mxu0 %v348
    %378 = vmatprep.subr.mxu0 0.0
    %379 = vmatpush1.msra.mxu0 %v349
    %380 = vmatprep.subr.mxu0 0.0
    %381 = vmatpush1.msra.mxu0 %v366
    %382 = vmatprep.subr.mxu0 0.0
    %383 = vmatpush1.msra.mxu0 0.0
    %384 = vmatprep.subr.mxu0 0.0
    %385 = vmatpush1.msra.mxu0 0.0
    %386 = vmatprep.subr.mxu0 0.0
    %387 = vmatpush1.msra.mxu0 0.0
    %388 = vmatprep.subr.mxu0 0.0
    %389 = vmatpush1.msra.mxu0 0.0
    %390 = vmatprep.subr.mxu0 0.0
    %391 = vmatpush1.msra.mxu0 0.0
    %392 = vmatprep.subr.mxu0 0.0
    %393 = vmatpush1.msra.mxu0 0.0
    %394 = vmatprep.subr.mxu0 0.0
    %395 = vmatpush1.msra.mxu0 0.0
    %396 = vmatprep.subr.mxu0 0.0
    %397 = vmatpush1.msra.mxu0 0.0
    %398 = vmatprep.subr.mxu0 0.0
    %399 = vmatpush1.msra.mxu0 0.0
    %400 = vmatprep.subr.mxu0 0.0
    %401 = vmatpush1.msra.mxu0 0.0
    %402 = vmatprep.subr.mxu0 0.0
    %403 = vmatpush1.msra.mxu0 0.0
    %404 = vmatprep.subr.mxu0 0.0
    %405 = vmatpush1.msra.mxu0 0.0
    %406 = vmatprep.subr.mxu0 0.0
    %407 = vmatpush1.msra.mxu0 0.0
    %408 = vmatprep.subr.mxu0 0.0
    %409 = vmatpush1.msra.mxu0 0.0
    %410 = vmatprep.subr.mxu0 0.0
    %411 = vmatpush1.msra.mxu0 0.0
    %412 = vmatprep.subr.mxu0 0.0
    %413 = vmatpush1.msra.mxu0 0.0
    %414 = vmatprep.subr.mxu0 0.0
    %415 = vmatpush1.msra.mxu0 0.0
    %416 = vmatprep.subr.mxu0 0.0
    %417 = vmatpush1.msra.mxu0 0.0
    %418 = vmatprep.subr.mxu0 0.0
    %419 = vmatpush1.msra.mxu0 0.0
    %420 = vmatprep.subr.mxu0 0.0
    %421 = vmatpush1.msra.mxu0 0.0
    %422 = vmatprep.subr.mxu0 0.0
    %423 = vmatpush1.msra.mxu0 0.0
    %424 = vmatprep.subr.mxu0 0.0
    %425 = vmatpush1.msra.mxu0 0.0
    %426 = vmatprep.subr.mxu0 0.0
    %427 = vmatpush1.msra.mxu0 0.0
    %428 = vmatprep.subr.mxu0 0.0
    %429 = vmatpush1.msra.mxu0 0.0
    %430 = vmatprep.subr.mxu0 0.0
    %431 = vmatpush1.msra.mxu0 0.0
    %432 = vmatprep.mubr.f32.mxu0 0.0
    %433 = vmatmul.mubr.f32.gmra.mrb[0].mxu0 %v353
    %v434 = vpop.f32.mrb[0].mxu0
    %v435 = vadd.f32 0.0, %v434
    %v436 = vpop.f32.mrb[0].mxu0
    %437 = vmatprep.mubr.f32.mxu0 0.0
    %438 = vmatmul.mubr.f32.gmra.mrb[0].mxu0 %v356
    %v439 = vpop.f32.mrb[0].mxu0
    %v440 = vadd.f32 0.0, %v439
    %v441 = vpop.f32.mrb[0].mxu0
    %442 = vmatprep.mubr.f32.mxu0 0.0
    %443 = vmatmul.mubr.f32.gmra.mrb[0].mxu0 %v359
    %v444 = vpop.f32.mrb[0].mxu0
    %v445 = vadd.f32 0.0, %v444
    %v446 = vpop.f32.mrb[0].mxu0
    %447 = vmatprep.mubr.f32.mxu0 0.0
    %448 = vmatmul.mubr.f32.gmra.mrb[0].mxu0 %v362
    %v449 = vpop.f32.mrb[0].mxu0
    %v450 = vadd.f32 0.0, %v449
    %v451 = vpop.f32.mrb[0].mxu0
    %452 = vdwg.mxu0
    %vm455 = vcmask 1040384
    %v456 = vrot.slane %v435, 7
    %v457 = vrot.slane %v440, 7
    %v458 = vsel %vm455, %v456, %v457
    %vm463 = vcmask 1042432
    %v464 = vrot.slane %v445, 5
    %v465 = vrot.slane %v450, 5
    %v466 = vsel %vm463, %v464, %v465
    %v469 = vsel %vm455, 0.0, %v456
    %v470 = vsel %vm455, %v457, 0.0
    %v471 = vsel %vm463, %v470, %v464
    %v472 = vsel %vm463, %v465, 0.0
    %476 = vrot.lane.b32.xlu0 %v469, 1
    %v477 = vpop.permute.xlu0 %476
    %478 = vrot.lane.b32.xlu0 %v458, 1
    %v479 = vpop.permute.xlu0 %478
    %480 = vrot.lane.b32.xlu0 %v471, 1
    %v481 = vpop.permute.xlu0 %480
    %482 = vrot.lane.b32.xlu0 %v466, 1
    %v483 = vpop.permute.xlu0 %482
    %484 = vrot.lane.b32.xlu0 %v472, 1
    %v485 = vpop.permute.xlu0 %484
    %vm491 = vcmask 7168
    %v492 = vsel %vm491, 0.0, %v477
    %v493 = vsel %vm491, 0.0, %v479
    %v494 = vsel %vm491, 0.0, %v481
    %v495 = vsel %vm491, 0.0, %v483
    %v496 = vsel %vm491, 0.0, %v485
    %vm497 = vcmask 269312
    %v498 = vsel %vm497, %v492, 0.0
    %v499 = vsel %vm497, %v493, 0.0
    %v500 = vsel %vm497, %v494, 0.0
    %v501 = vsel %vm497, %v495, 0.0
    %v502 = vsel %vm497, %v496, 0.0
    %v503 = vld [vmem:[%s2] sm:$0xff]
    %v504 = vld [vmem:[%s2 + $0x8] sm:$0xff]
    %v505 = vld [vmem:[%s2 + $0x10] sm:$0x1]
    %v506 = vld [vmem:[%s2 + $0x18] sm:$0x1]
    %v507 = vld [vmem:[%s3] sm:$0x3]
    %v509 = vlaneseq
    %v510 = vshrl.u32 %v509, 7
    %v511 = vsub.s32 0, %v510
    %v512 = vrot.slane %v507, %v511
    %v513 = vlaneseq
    %v514 = vshrl.u32 %v513, 7
    %v515 = vsub.s32 1, %v514
    %v516 = vrot.slane %v507, %v515
    %524 = vrot.lane.b32.xlu0 %v498, 32
    %v525 = vpop.permute.xlu0 %524
    %526 = vrot.lane.b32.xlu0 %v499, 32
    %v527 = vpop.permute.xlu0 %526
    %528 = vrot.lane.b32.xlu0 %v500, 32
    %v529 = vpop.permute.xlu0 %528
    %530 = vrot.lane.b32.xlu0 %v501, 32
    %v531 = vpop.permute.xlu0 %530
    %532 = vrot.lane.b32.xlu0 %v502, 32
    %v533 = vpop.permute.xlu0 %532
    %539 = vrot.lane.b32.xlu0 %v498, 64
    %v540 = vpop.permute.xlu0 %539
    %541 = vrot.lane.b32.xlu0 %v499, 64
    %v542 = vpop.permute.xlu0 %541
    %543 = vrot.lane.b32.xlu0 %v500, 64
    %v544 = vpop.permute.xlu0 %543
    %545 = vrot.lane.b32.xlu0 %v501, 64
    %v546 = vpop.permute.xlu0 %545
    %547 = vrot.lane.b32.xlu0 %v502, 64
    %v548 = vpop.permute.xlu0 %547
    %554 = vrot.lane.b32.xlu0 %v498, 96
    %v555 = vpop.permute.xlu0 %554
    %556 = vrot.lane.b32.xlu0 %v499, 96
    %v557 = vpop.permute.xlu0 %556
    %558 = vrot.lane.b32.xlu0 %v500, 96
    %v559 = vpop.permute.xlu0 %558
    %560 = vrot.lane.b32.xlu0 %v501, 96
    %v561 = vpop.permute.xlu0 %560
    %562 = vrot.lane.b32.xlu0 %v502, 96
    %v563 = vpop.permute.xlu0 %562
    %vm569 = vcmask 261120
    %v570 = vsel %vm569, %v498, %v525
    %v571 = vsel %vm569, %v499, %v527
    %v572 = vsel %vm569, %v500, %v529
    %v573 = vsel %vm569, %v501, %v531
    %v574 = vsel %vm569, %v502, %v533
    %vm575 = vcmask 523264
    %v576 = vsel %vm575, %v570, %v540
    %v577 = vsel %vm575, %v571, %v542
    %v578 = vsel %vm575, %v572, %v544
    %v579 = vsel %vm575, %v573, %v546
    %v580 = vsel %vm575, %v574, %v548
    %vm581 = vcmask 785408
    %v582 = vsel %vm581, %v576, %v555
    %v583 = vsel %vm581, %v577, %v557
    %v584 = vsel %vm581, %v578, %v559
    %v585 = vsel %vm581, %v579, %v561
    %v586 = vsel %vm581, %v580, %v563
    %v587 = vlaneseq
    %v588 = vshrl.u32 %v587, 7
    %v589 = vsub.s32 0, %v588
    %v590 = vrot.slane %v503, %v589
    %v591 = vlaneseq
    %v592 = vshrl.u32 %v591, 7
    %v593 = vsub.s32 0, %v592
    %v594 = vrot.slane %v504, %v593
    %v595 = vmul.f32 %v582, %v590
    %v596 = vmul.f32 %v582, %v594
    %v597 = vmul.f32 %v583, %v590
    %v598 = vmul.f32 %v583, %v594
    %v599 = vmul.f32 %v584, %v590
    %v600 = vmul.f32 %v584, %v594
    %v601 = vmul.f32 %v585, %v590
    %v602 = vmul.f32 %v585, %v594
    %v603 = vmul.f32 %v586, %v590
    %v604 = vmul.f32 %v586, %v594
    %v605 = vadd.f32 %v512, %v595
    %v606 = vadd.f32 %v516, %v596
    %v607 = vadd.f32 %v512, %v597
    %v608 = vadd.f32 %v516, %v598
    %v609 = vadd.f32 %v512, %v599
    %v610 = vadd.f32 %v516, %v600
    %v611 = vadd.f32 %v512, %v601
    %v612 = vadd.f32 %v516, %v602
    %v613 = vadd.f32 %v512, %v603
    %v614 = vadd.f32 %v516, %v604
    %v615 = vlaneseq
    %v616 = vshrl.u32 %v615, 7
    %v617 = vsub.s32 3, %v616
    %v618 = vrot.slane %v503, %v617
    %v619 = vlaneseq
    %v620 = vshrl.u32 %v619, 7
    %v621 = vsub.s32 3, %v620
    %v622 = vrot.slane %v504, %v621
    %v623 = vmul.f32 %v582, %v618
    %v624 = vmul.f32 %v582, %v622
    %v625 = vmul.f32 %v583, %v618
    %v626 = vmul.f32 %v583, %v622
    %v627 = vmul.f32 %v584, %v618
    %v628 = vmul.f32 %v584, %v622
    %v629 = vmul.f32 %v585, %v618
    %v630 = vmul.f32 %v585, %v622
    %v631 = vmul.f32 %v586, %v618
    %v632 = vmul.f32 %v586, %v622
    %vm643 = vcmask 1046528
    %v644 = vrot.slane %v623, 1
    %v645 = vrot.slane %v625, 1
    %v646 = vsel %vm643, %v644, %v645
    %v647 = vrot.slane %v624, 1
    %v648 = vrot.slane %v626, 1
    %v649 = vsel %vm643, %v647, %v648
    %v650 = vrot.slane %v627, 1
    %v651 = vsel %vm643, %v645, %v650
    %v652 = vrot.slane %v628, 1
    %v653 = vsel %vm643, %v648, %v652
    %v654 = vrot.slane %v629, 1
    %v655 = vsel %vm643, %v650, %v654
    %v656 = vrot.slane %v630, 1
    %v657 = vsel %vm643, %v652, %v656
    %v658 = vrot.slane %v631, 1
    %v659 = vsel %vm643, %v654, %v658
    %v660 = vrot.slane %v632, 1
    %v661 = vsel %vm643, %v656, %v660
    %v672 = vadd.f32 %v605, %v646
    %v673 = vadd.f32 %v606, %v649
    %v674 = vadd.f32 %v607, %v651
    %v675 = vadd.f32 %v608, %v653
    %v676 = vadd.f32 %v609, %v655
    %v677 = vadd.f32 %v610, %v657
    %v678 = vadd.f32 %v611, %v659
    %v679 = vadd.f32 %v612, %v661
    %v680 = vadd.f32 %v613, %v658
    %v681 = vadd.f32 %v614, %v660
    %v682 = vlaneseq
    %v683 = vshrl.u32 %v682, 7
    %v684 = vsub.s32 6, %v683
    %v685 = vrot.slane %v503, %v684
    %v686 = vlaneseq
    %v687 = vshrl.u32 %v686, 7
    %v688 = vsub.s32 6, %v687
    %v689 = vrot.slane %v504, %v688
    %v690 = vmul.f32 %v582, %v685
    %v691 = vmul.f32 %v582, %v689
    %v692 = vmul.f32 %v583, %v685
    %v693 = vmul.f32 %v583, %v689
    %v694 = vmul.f32 %v584, %v685
    %v695 = vmul.f32 %v584, %v689
    %v696 = vmul.f32 %v585, %v685
    %v697 = vmul.f32 %v585, %v689
    %v698 = vmul.f32 %v586, %v685
    %v699 = vmul.f32 %v586, %v689
    %vm710 = vcmask 1045504
    %v711 = vrot.slane %v690, 2
    %v712 = vrot.slane %v692, 2
    %v713 = vsel %vm710, %v711, %v712
    %v714 = vrot.slane %v691, 2
    %v715 = vrot.slane %v693, 2
    %v716 = vsel %vm710, %v714, %v715
    %v717 = vrot.slane %v694, 2
    %v718 = vsel %vm710, %v712, %v717
    %v719 = vrot.slane %v695, 2
    %v720 = vsel %vm710, %v715, %v719
    %v721 = vrot.slane %v696, 2
    %v722 = vsel %vm710, %v717, %v721
    %v723 = vrot.slane %v697, 2
    %v724 = vsel %vm710, %v719, %v723
    %v725 = vrot.slane %v698, 2
    %v726 = vsel %vm710, %v721, %v725
    %v727 = vrot.slane %v699, 2
    %v728 = vsel %vm710, %v723, %v727
    %v739 = vadd.f32 %v672, %v713
    %v740 = vadd.f32 %v673, %v716
    %v741 = vadd.f32 %v674, %v718
    %v742 = vadd.f32 %v675, %v720
    %v743 = vadd.f32 %v676, %v722
    %v744 = vadd.f32 %v677, %v724
    %v745 = vadd.f32 %v678, %v726
    %v746 = vadd.f32 %v679, %v728
    %v747 = vadd.f32 %v680, %v725
    %v748 = vadd.f32 %v681, %v727
    %749 = vrot.lane.b32.xlu0 %v498, 127
    %v750 = vpop.permute.xlu0 %749
    %751 = vrot.lane.b32.xlu0 %v499, 127
    %v752 = vpop.permute.xlu0 %751
    %753 = vrot.lane.b32.xlu0 %v500, 127
    %v754 = vpop.permute.xlu0 %753
    %755 = vrot.lane.b32.xlu0 %v501, 127
    %v756 = vpop.permute.xlu0 %755
    %757 = vrot.lane.b32.xlu0 %v502, 127
    %v758 = vpop.permute.xlu0 %757
    %764 = vrot.lane.b32.xlu0 %v498, 31
    %v765 = vpop.permute.xlu0 %764
    %766 = vrot.lane.b32.xlu0 %v499, 31
    %v767 = vpop.permute.xlu0 %766
    %768 = vrot.lane.b32.xlu0 %v500, 31
    %v769 = vpop.permute.xlu0 %768
    %770 = vrot.lane.b32.xlu0 %v501, 31
    %v771 = vpop.permute.xlu0 %770
    %772 = vrot.lane.b32.xlu0 %v502, 31
    %v773 = vpop.permute.xlu0 %772
    %779 = vrot.lane.b32.xlu0 %v498, 63
    %v780 = vpop.permute.xlu0 %779
    %781 = vrot.lane.b32.xlu0 %v499, 63
    %v782 = vpop.permute.xlu0 %781
    %783 = vrot.lane.b32.xlu0 %v500, 63
    %v784 = vpop.permute.xlu0 %783
    %785 = vrot.lane.b32.xlu0 %v501, 63
    %v786 = vpop.permute.xlu0 %785
    %787 = vrot.lane.b32.xlu0 %v502, 63
    %v788 = vpop.permute.xlu0 %787
    %794 = vrot.lane.b32.xlu0 %v498, 95
    %v795 = vpop.permute.xlu0 %794
    %796 = vrot.lane.b32.xlu0 %v499, 95
    %v797 = vpop.permute.xlu0 %796
    %798 = vrot.lane.b32.xlu0 %v500, 95
    %v799 = vpop.permute.xlu0 %798
    %800 = vrot.lane.b32.xlu0 %v501, 95
    %v801 = vpop.permute.xlu0 %800
    %802 = vrot.lane.b32.xlu0 %v502, 95
    %v803 = vpop.permute.xlu0 %802
    %v809 = vsel %vm569, %v750, %v765
    %v810 = vsel %vm569, %v752, %v767
    %v811 = vsel %vm569, %v754, %v769
    %v812 = vsel %vm569, %v756, %v771
    %v813 = vsel %vm569, %v758, %v773
    %v814 = vsel %vm575, %v809, %v780
    %v815 = vsel %vm575, %v810, %v782
    %v816 = vsel %vm575, %v811, %v784
    %v817 = vsel %vm575, %v812, %v786
    %v818 = vsel %vm575, %v813, %v788
    %v819 = vsel %vm581, %v814, %v795
    %v820 = vsel %vm581, %v815, %v797
    %v821 = vsel %vm581, %v816, %v799
    %v822 = vsel %vm581, %v817, %v801
    %v823 = vsel %vm581, %v818, %v803
    %v824 = vlaneseq
    %v825 = vshrl.u32 %v824, 7
    %v826 = vsub.s32 1, %v825
    %v827 = vrot.slane %v503, %v826
    %v828 = vlaneseq
    %v829 = vshrl.u32 %v828, 7
    %v830 = vsub.s32 1, %v829
    %v831 = vrot.slane %v504, %v830
    %v832 = vmul.f32 %v819, %v827
    %v833 = vmul.f32 %v819, %v831
    %v834 = vmul.f32 %v820, %v827
    %v835 = vmul.f32 %v820, %v831
    %v836 = vmul.f32 %v821, %v827
    %v837 = vmul.f32 %v821, %v831
    %v838 = vmul.f32 %v822, %v827
    %v839 = vmul.f32 %v822, %v831
    %v840 = vmul.f32 %v823, %v827
    %v841 = vmul.f32 %v823, %v831
    %v842 = vadd.f32 %v739, %v832
    %v843 = vadd.f32 %v740, %v833
    %v844 = vadd.f32 %v741, %v834
    %v845 = vadd.f32 %v742, %v835
    %v846 = vadd.f32 %v743, %v836
    %v847 = vadd.f32 %v744, %v837
    %v848 = vadd.f32 %v745, %v838
    %v849 = vadd.f32 %v746, %v839
    %v850 = vadd.f32 %v747, %v840
    %v851 = vadd.f32 %v748, %v841
    %v852 = vlaneseq
    %v853 = vshrl.u32 %v852, 7
    %v854 = vsub.s32 4, %v853
    %v855 = vrot.slane %v503, %v854
    %v856 = vlaneseq
    %v857 = vshrl.u32 %v856, 7
    %v858 = vsub.s32 4, %v857
    %v859 = vrot.slane %v504, %v858
    %v860 = vmul.f32 %v819, %v855
    %v861 = vmul.f32 %v819, %v859
    %v862 = vmul.f32 %v820, %v855
    %v863 = vmul.f32 %v820, %v859
    %v864 = vmul.f32 %v821, %v855
    %v865 = vmul.f32 %v821, %v859
    %v866 = vmul.f32 %v822, %v855
    %v867 = vmul.f32 %v822, %v859
    %v868 = vmul.f32 %v823, %v855
    %v869 = vmul.f32 %v823, %v859
    %v880 = vrot.slane %v860, 1
    %v881 = vrot.slane %v862, 1
    %v882 = vsel %vm643, %v880, %v881
    %v883 = vrot.slane %v861, 1
    %v884 = vrot.slane %v863, 1
    %v885 = vsel %vm643, %v883, %v884
    %v886 = vrot.slane %v864, 1
    %v887 = vsel %vm643, %v881, %v886
    %v888 = vrot.slane %v865, 1
    %v889 = vsel %vm643, %v884, %v888
    %v890 = vrot.slane %v866, 1
    %v891 = vsel %vm643, %v886, %v890
    %v892 = vrot.slane %v867, 1
    %v893 = vsel %vm643, %v888, %v892
    %v894 = vrot.slane %v868, 1
    %v895 = vsel %vm643, %v890, %v894
    %v896 = vrot.slane %v869, 1
    %v897 = vsel %vm643, %v892, %v896
    %v908 = vadd.f32 %v842, %v882
    %v909 = vadd.f32 %v843, %v885
    %v910 = vadd.f32 %v844, %v887
    %v911 = vadd.f32 %v845, %v889
    %v912 = vadd.f32 %v846, %v891
    %v913 = vadd.f32 %v847, %v893
    %v914 = vadd.f32 %v848, %v895
    %v915 = vadd.f32 %v849, %v897
    %v916 = vadd.f32 %v850, %v894
    %v917 = vadd.f32 %v851, %v896
    %v918 = vlaneseq
    %v919 = vshrl.u32 %v918, 7
    %v920 = vsub.s32 7, %v919
    %v921 = vrot.slane %v503, %v920
    %v922 = vlaneseq
    %v923 = vshrl.u32 %v922, 7
    %v924 = vsub.s32 7, %v923
    %v925 = vrot.slane %v504, %v924
    %v926 = vmul.f32 %v819, %v921
    %v927 = vmul.f32 %v819, %v925
    %v928 = vmul.f32 %v820, %v921
    %v929 = vmul.f32 %v820, %v925
    %v930 = vmul.f32 %v821, %v921
    %v931 = vmul.f32 %v821, %v925
    %v932 = vmul.f32 %v822, %v921
    %v933 = vmul.f32 %v822, %v925
    %v934 = vmul.f32 %v823, %v921
    %v935 = vmul.f32 %v823, %v925
    %v946 = vrot.slane %v926, 2
    %v947 = vrot.slane %v928, 2
    %v948 = vsel %vm710, %v946, %v947
    %v949 = vrot.slane %v927, 2
    %v950 = vrot.slane %v929, 2
    %v951 = vsel %vm710, %v949, %v950
    %v952 = vrot.slane %v930, 2
    %v953 = vsel %vm710, %v947, %v952
    %v954 = vrot.slane %v931, 2
    %v955 = vsel %vm710, %v950, %v954
    %v956 = vrot.slane %v932, 2
    %v957 = vsel %vm710, %v952, %v956
    %v958 = vrot.slane %v933, 2
    %v959 = vsel %vm710, %v954, %v958
    %v960 = vrot.slane %v934, 2
    %v961 = vsel %vm710, %v956, %v960
    %v962 = vrot.slane %v935, 2
    %v963 = vsel %vm710, %v958, %v962
    %v974 = vadd.f32 %v908, %v948
    %v975 = vadd.f32 %v909, %v951
    %v976 = vadd.f32 %v910, %v953
    %v977 = vadd.f32 %v911, %v955
    %v978 = vadd.f32 %v912, %v957
    %v979 = vadd.f32 %v913, %v959
    %v980 = vadd.f32 %v914, %v961
    %v981 = vadd.f32 %v915, %v963
    %v982 = vadd.f32 %v916, %v960
    %v983 = vadd.f32 %v917, %v962
    %984 = vrot.lane.b32.xlu0 %v498, 126
    %v985 = vpop.permute.xlu0 %984
    %986 = vrot.lane.b32.xlu0 %v499, 126
    %v987 = vpop.permute.xlu0 %986
    %988 = vrot.lane.b32.xlu0 %v500, 126
    %v989 = vpop.permute.xlu0 %988
    %990 = vrot.lane.b32.xlu0 %v501, 126
    %v991 = vpop.permute.xlu0 %990
    %992 = vrot.lane.b32.xlu0 %v502, 126
    %v993 = vpop.permute.xlu0 %992
    %999 = vrot.lane.b32.xlu0 %v498, 30
    %v1000 = vpop.permute.xlu0 %999
    %1001 = vrot.lane.b32.xlu0 %v499, 30
    %v1002 = vpop.permute.xlu0 %1001
    %1003 = vrot.lane.b32.xlu0 %v500, 30
    %v1004 = vpop.permute.xlu0 %1003
    %1005 = vrot.lane.b32.xlu0 %v501, 30
    %v1006 = vpop.permute.xlu0 %1005
    %1007 = vrot.lane.b32.xlu0 %v502, 30
    %v1008 = vpop.permute.xlu0 %1007
    %1014 = vrot.lane.b32.xlu0 %v498, 62
    %v1015 = vpop.permute.xlu0 %1014
    %1016 = vrot.lane.b32.xlu0 %v499, 62
    %v1017 = vpop.permute.xlu0 %1016
    %1018 = vrot.lane.b32.xlu0 %v500, 62
    %v1019 = vpop.permute.xlu0 %1018
    %1020 = vrot.lane.b32.xlu0 %v501, 62
    %v1021 = vpop.permute.xlu0 %1020
    %1022 = vrot.lane.b32.xlu0 %v502, 62
    %v1023 = vpop.permute.xlu0 %1022
    %1029 = vrot.lane.b32.xlu0 %v498, 94
    %v1030 = vpop.permute.xlu0 %1029
    %1031 = vrot.lane.b32.xlu0 %v499, 94
    %v1032 = vpop.permute.xlu0 %1031
    %1033 = vrot.lane.b32.xlu0 %v500, 94
    %v1034 = vpop.permute.xlu0 %1033
    %1035 = vrot.lane.b32.xlu0 %v501, 94
    %v1036 = vpop.permute.xlu0 %1035
    %1037 = vrot.lane.b32.xlu0 %v502, 94
    %v1038 = vpop.permute.xlu0 %1037
    %v1044 = vsel %vm569, %v985, %v1000
    %v1045 = vsel %vm569, %v987, %v1002
    %v1046 = vsel %vm569, %v989, %v1004
    %v1047 = vsel %vm569, %v991, %v1006
    %v1048 = vsel %vm569, %v993, %v1008
    %v1049 = vsel %vm575, %v1044, %v1015
    %v1050 = vsel %vm575, %v1045, %v1017
    %v1051 = vsel %vm575, %v1046, %v1019
    %v1052 = vsel %vm575, %v1047, %v1021
    %v1053 = vsel %vm575, %v1048, %v1023
    %v1054 = vsel %vm581, %v1049, %v1030
    %v1055 = vsel %vm581, %v1050, %v1032
    %v1056 = vsel %vm581, %v1051, %v1034
    %v1057 = vsel %vm581, %v1052, %v1036
    %v1058 = vsel %vm581, %v1053, %v1038
    %v1059 = vlaneseq
    %v1060 = vshrl.u32 %v1059, 7
    %v1061 = vsub.s32 2, %v1060
    %v1062 = vrot.slane %v503, %v1061
    %v1063 = vlaneseq
    %v1064 = vshrl.u32 %v1063, 7
    %v1065 = vsub.s32 2, %v1064
    %v1066 = vrot.slane %v504, %v1065
    %v1067 = vmul.f32 %v1054, %v1062
    %v1068 = vmul.f32 %v1054, %v1066
    %v1069 = vmul.f32 %v1055, %v1062
    %v1070 = vmul.f32 %v1055, %v1066
    %v1071 = vmul.f32 %v1056, %v1062
    %v1072 = vmul.f32 %v1056, %v1066
    %v1073 = vmul.f32 %v1057, %v1062
    %v1074 = vmul.f32 %v1057, %v1066
    %v1075 = vmul.f32 %v1058, %v1062
    %v1076 = vmul.f32 %v1058, %v1066
    %v1077 = vadd.f32 %v974, %v1067
    %v1078 = vadd.f32 %v975, %v1068
    %v1079 = vadd.f32 %v976, %v1069
    %v1080 = vadd.f32 %v977, %v1070
    %v1081 = vadd.f32 %v978, %v1071
    %v1082 = vadd.f32 %v979, %v1072
    %v1083 = vadd.f32 %v980, %v1073
    %v1084 = vadd.f32 %v981, %v1074
    %v1085 = vadd.f32 %v982, %v1075
    %v1086 = vadd.f32 %v983, %v1076
    %v1087 = vlaneseq
    %v1088 = vshrl.u32 %v1087, 7
    %v1089 = vsub.s32 5, %v1088
    %v1090 = vrot.slane %v503, %v1089
    %v1091 = vlaneseq
    %v1092 = vshrl.u32 %v1091, 7
    %v1093 = vsub.s32 5, %v1092
    %v1094 = vrot.slane %v504, %v1093
    %v1095 = vmul.f32 %v1054, %v1090
    %v1096 = vmul.f32 %v1054, %v1094
    %v1097 = vmul.f32 %v1055, %v1090
    %v1098 = vmul.f32 %v1055, %v1094
    %v1099 = vmul.f32 %v1056, %v1090
    %v1100 = vmul.f32 %v1056, %v1094
    %v1101 = vmul.f32 %v1057, %v1090
    %v1102 = vmul.f32 %v1057, %v1094
    %v1103 = vmul.f32 %v1058, %v1090
    %v1104 = vmul.f32 %v1058, %v1094
    %v1115 = vrot.slane %v1095, 1
    %v1116 = vrot.slane %v1097, 1
    %v1117 = vsel %vm643, %v1115, %v1116
    %v1118 = vrot.slane %v1096, 1
    %v1119 = vrot.slane %v1098, 1
    %v1120 = vsel %vm643, %v1118, %v1119
    %v1121 = vrot.slane %v1099, 1
    %v1122 = vsel %vm643, %v1116, %v1121
    %v1123 = vrot.slane %v1100, 1
    %v1124 = vsel %vm643, %v1119, %v1123
    %v1125 = vrot.slane %v1101, 1
    %v1126 = vsel %vm643, %v1121, %v1125
    %v1127 = vrot.slane %v1102, 1
    %v1128 = vsel %vm643, %v1123, %v1127
    %v1129 = vrot.slane %v1103, 1
    %v1130 = vsel %vm643, %v1125, %v1129
    %v1131 = vrot.slane %v1104, 1
    %v1132 = vsel %vm643, %v1127, %v1131
    %v1143 = vadd.f32 %v1077, %v1117
    %v1144 = vadd.f32 %v1078, %v1120
    %v1145 = vadd.f32 %v1079, %v1122
    %v1146 = vadd.f32 %v1080, %v1124
    %v1147 = vadd.f32 %v1081, %v1126
    %v1148 = vadd.f32 %v1082, %v1128
    %v1149 = vadd.f32 %v1083, %v1130
    %v1150 = vadd.f32 %v1084, %v1132
    %v1151 = vadd.f32 %v1085, %v1129
    %v1152 = vadd.f32 %v1086, %v1131
    %v1153 = vlaneseq
    %v1154 = vshrl.u32 %v1153, 7
    %v1155 = vsub.s32 0, %v1154
    %v1156 = vrot.slane %v505, %v1155
    %v1157 = vlaneseq
    %v1158 = vshrl.u32 %v1157, 7
    %v1159 = vsub.s32 0, %v1158
    %v1160 = vrot.slane %v506, %v1159
    %v1161 = vmul.f32 %v1054, %v1156
    %v1162 = vmul.f32 %v1054, %v1160
    %v1163 = vmul.f32 %v1055, %v1156
    %v1164 = vmul.f32 %v1055, %v1160
    %v1165 = vmul.f32 %v1056, %v1156
    %v1166 = vmul.f32 %v1056, %v1160
    %v1167 = vmul.f32 %v1057, %v1156
    %v1168 = vmul.f32 %v1057, %v1160
    %v1169 = vmul.f32 %v1058, %v1156
    %v1170 = vmul.f32 %v1058, %v1160
    %v1181 = vrot.slane %v1161, 2
    %v1182 = vrot.slane %v1163, 2
    %v1183 = vsel %vm710, %v1181, %v1182
    %v1184 = vrot.slane %v1162, 2
    %v1185 = vrot.slane %v1164, 2
    %v1186 = vsel %vm710, %v1184, %v1185
    %v1187 = vrot.slane %v1165, 2
    %v1188 = vsel %vm710, %v1182, %v1187
    %v1189 = vrot.slane %v1166, 2
    %v1190 = vsel %vm710, %v1185, %v1189
    %v1191 = vrot.slane %v1167, 2
    %v1192 = vsel %vm710, %v1187, %v1191
    %v1193 = vrot.slane %v1168, 2
    %v1194 = vsel %vm710, %v1189, %v1193
    %v1195 = vrot.slane %v1169, 2
    %v1196 = vsel %vm710, %v1191, %v1195
    %v1197 = vrot.slane %v1170, 2
    %v1198 = vsel %vm710, %v1193, %v1197
    %v1209 = vadd.f32 %v1143, %v1183
    %v1210 = vadd.f32 %v1144, %v1186
    %v1211 = vadd.f32 %v1145, %v1188
    %v1212 = vadd.f32 %v1146, %v1190
    %v1213 = vadd.f32 %v1147, %v1192
    %v1214 = vadd.f32 %v1148, %v1194
    %v1215 = vadd.f32 %v1149, %v1196
    %v1216 = vadd.f32 %v1150, %v1198
    %v1217 = vadd.f32 %v1151, %v1195
    %v1218 = vadd.f32 %v1152, %v1197
    %v1219 = vmax.f32 %v1209, 0.0
    %v1220 = vmax.f32 %v1210, 0.0
    %v1221 = vmax.f32 %v1211, 0.0
    %v1222 = vmax.f32 %v1212, 0.0
    %v1223 = vmax.f32 %v1213, 0.0
    %v1224 = vmax.f32 %v1214, 0.0
    %v1225 = vmax.f32 %v1215, 0.0
    %v1226 = vmax.f32 %v1216, 0.0
    %v1227 = vmax.f32 %v1217, 0.0
    %v1228 = vmax.f32 %v1218, 0.0
    %1239 = vrot.lane.b32.xlu0 %v1219, 127
    %v1240 = vpop.permute.xlu0 %1239
    %1241 = vrot.lane.b32.xlu0 %v1220, 127
    %v1242 = vpop.permute.xlu0 %1241
    %1243 = vrot.lane.b32.xlu0 %v1221, 127
    %v1244 = vpop.permute.xlu0 %1243
    %1245 = vrot.lane.b32.xlu0 %v1222, 127
    %v1246 = vpop.permute.xlu0 %1245
    %1247 = vrot.lane.b32.xlu0 %v1223, 127
    %v1248 = vpop.permute.xlu0 %1247
    %1249 = vrot.lane.b32.xlu0 %v1224, 127
    %v1250 = vpop.permute.xlu0 %1249
    %1251 = vrot.lane.b32.xlu0 %v1225, 127
    %v1252 = vpop.permute.xlu0 %1251
    %1253 = vrot.lane.b32.xlu0 %v1226, 127
    %v1254 = vpop.permute.xlu0 %1253
    %1255 = vrot.lane.b32.xlu0 %v1227, 127
    %v1256 = vpop.permute.xlu0 %1255
    %1257 = vrot.lane.b32.xlu0 %v1228, 127
    %v1258 = vpop.permute.xlu0 %1257
    %vm1259 = vcmask 1039360
    %v1260 = vsel %vm1259, %v1240, %v1242
    %v1261 = vsel %vm1259, %v1244, %v1246
    %v1262 = vsel %vm1259, %v1248, %v1250
    %v1263 = vsel %vm1259, %v1252, %v1254
    %v1264 = vsel %vm1259, %v1256, %v1258
    %v1280 = vsel %vm1259, %v1242, %v1240
    %v1281 = vsel %vm1259, %v1246, %v1244
    %v1282 = vsel %vm1259, %v1250, %v1248
    %v1283 = vsel %vm1259, %v1254, %v1252
    %v1284 = vsel %vm1259, %v1258, %v1256
    %v1285 = vmax.f32 %v1219, %v1260
    %v1286 = vmax.f32 %v1220, %v1280
    %v1287 = vmax.f32 %v1221, %v1261
    %v1288 = vmax.f32 %v1222, %v1281
    %v1289 = vmax.f32 %v1223, %v1262
    %v1290 = vmax.f32 %v1224, %v1282
    %v1291 = vmax.f32 %v1225, %v1263
    %v1292 = vmax.f32 %v1226, %v1283
    %v1293 = vmax.f32 %v1227, %v1264
    %v1294 = vmax.f32 %v1228, %v1284
    %v1295 = vlaneseq
    %v1296 = vshrl.u32 %v1295, 7
    %v1297 = vadd.s32 %v1296, 8
    %v1298 = vadd.s32 %v1296, 16
    %v1299 = vadd.s32 %v1296, 24
    %v1300 = vadd.s32 %v1296, 32
    %v1301 = vadd.s32 %v1296, 40
    %v1302 = vadd.s32 %v1296, 48
    %v1303 = vadd.s32 %v1296, 56
    %v1304 = vadd.s32 %v1296, 64
    %v1305 = vadd.s32 %v1296, 72
    %v1306 = vadd.s32 %v1296, 80
    %v1307 = vadd.s32 %v1296, 88
    %v1308 = vadd.s32 %v1296, 96
    %v1309 = vadd.s32 %v1296, 104
    %v1310 = vadd.s32 %v1296, 112
    %v1311 = vadd.s32 %v1296, 120
    %v1312 = vadd.s32 %v1296, 128
    %v1313 = vadd.s32 %v1296, 136
    %v1314 = vadd.s32 %v1296, 144
    %v1315 = vadd.s32 %v1296, 152
    %v1316 = vadd.s32 %v1296, 160
    %v1317 = vadd.s32 %v1296, 168
    %v1318 = vadd.s32 %v1296, 176
    %v1319 = vadd.s32 %v1296, 184
    %v1320 = vadd.s32 %v1296, 192
    %v1321 = vadd.s32 %v1296, 200
    %v1322 = vadd.s32 %v1296, 208
    %v1323 = vadd.s32 %v1296, 216
    %v1324 = vadd.s32 %v1296, 224
    %v1325 = vadd.s32 %v1296, 232
    %v1326 = vadd.s32 %v1296, 240
    %v1327 = vadd.s32 %v1296, 248
    %v1328 = vmul.u32 %v323, 2
    %vm1329 = vcmp.eq.s32.totalorder %v1296, %v1328
    %vm1330 = vcmp.eq.s32.totalorder %v1297, %v1328
    %vm1331 = vcmp.eq.s32.totalorder %v1298, %v1328
    %vm1332 = vcmp.eq.s32.totalorder %v1299, %v1328
    %vm1333 = vcmp.eq.s32.totalorder %v1300, %v1328
    %vm1334 = vcmp.eq.s32.totalorder %v1301, %v1328
    %vm1335 = vcmp.eq.s32.totalorder %v1302, %v1328
    %vm1336 = vcmp.eq.s32.totalorder %v1303, %v1328
    %vm1337 = vcmp.eq.s32.totalorder %v1304, %v1328
    %vm1338 = vcmp.eq.s32.totalorder %v1305, %v1328
    %vm1339 = vcmp.eq.s32.totalorder %v1306, %v1328
    %vm1340 = vcmp.eq.s32.totalorder %v1307, %v1328
    %vm1341 = vcmp.eq.s32.totalorder %v1308, %v1328
    %vm1342 = vcmp.eq.s32.totalorder %v1309, %v1328
    %vm1343 = vcmp.eq.s32.totalorder %v1310, %v1328
    %vm1344 = vcmp.eq.s32.totalorder %v1311, %v1328
    %vm1345 = vcmp.eq.s32.totalorder %v1312, %v1328
    %vm1346 = vcmp.eq.s32.totalorder %v1313, %v1328
    %vm1347 = vcmp.eq.s32.totalorder %v1314, %v1328
    %vm1348 = vcmp.eq.s32.totalorder %v1315, %v1328
    %vm1349 = vcmp.eq.s32.totalorder %v1316, %v1328
    %vm1350 = vcmp.eq.s32.totalorder %v1317, %v1328
    %vm1351 = vcmp.eq.s32.totalorder %v1318, %v1328
    %vm1352 = vcmp.eq.s32.totalorder %v1319, %v1328
    %vm1353 = vcmp.eq.s32.totalorder %v1320, %v1328
    %vm1354 = vcmp.eq.s32.totalorder %v1321, %v1328
    %vm1355 = vcmp.eq.s32.totalorder %v1322, %v1328
    %vm1356 = vcmp.eq.s32.totalorder %v1323, %v1328
    %vm1357 = vcmp.eq.s32.totalorder %v1324, %v1328
    %vm1358 = vcmp.eq.s32.totalorder %v1325, %v1328
    %vm1359 = vcmp.eq.s32.totalorder %v1326, %v1328
    %vm1360 = vcmp.eq.s32.totalorder %v1327, %v1328
    %v1361 = vsel %vm1329, 1.0, 0.0
    %v1362 = vsel %vm1330, 1.0, 0.0
    %v1363 = vsel %vm1331, 1.0, 0.0
    %v1364 = vsel %vm1332, 1.0, 0.0
    %v1365 = vsel %vm1333, 1.0, 0.0
    %v1366 = vsel %vm1334, 1.0, 0.0
    %v1367 = vsel %vm1335, 1.0, 0.0
    %v1368 = vsel %vm1336, 1.0, 0.0
    %v1369 = vsel %vm1337, 1.0, 0.0
    %v1370 = vsel %vm1338, 1.0, 0.0
    %v1371 = vsel %vm1339, 1.0, 0.0
    %v1372 = vsel %vm1340, 1.0, 0.0
    %v1373 = vsel %vm1341, 1.0, 0.0
    %v1374 = vsel %vm1342, 1.0, 0.0
    %v1375 = vsel %vm1343, 1.0, 0.0
    %v1376 = vsel %vm1344, 1.0, 0.0
    %v1377 = vsel %vm1345, 1.0, 0.0
    %v1378 = vsel %vm1346, 1.0, 0.0
    %v1379 = vsel %vm1347, 1.0, 0.0
    %v1380 = vsel %vm1348, 1.0, 0.0
    %v1381 = vsel %vm1349, 1.0, 0.0
    %v1382 = vsel %vm1350, 1.0, 0.0
    %v1383 = vsel %vm1351, 1.0, 0.0
    %v1384 = vsel %vm1352, 1.0, 0.0
    %v1385 = vsel %vm1353, 1.0, 0.0
    %v1386 = vsel %vm1354, 1.0, 0.0
    %v1387 = vsel %vm1355, 1.0, 0.0
    %v1388 = vsel %vm1356, 1.0, 0.0
    %v1389 = vsel %vm1357, 1.0, 0.0
    %v1390 = vsel %vm1358, 1.0, 0.0
    %v1391 = vsel %vm1359, 1.0, 0.0
    %v1392 = vsel %vm1360, 1.0, 0.0
    %1393 = vmatprep.subr.mxu0 0.0
    %1394 = vmatpush1.msra.mxu0 %v1361
    %1395 = vmatprep.subr.mxu0 0.0
    %1396 = vmatpush1.msra.mxu0 %v1362
    %1397 = vmatprep.subr.mxu0 0.0
    %1398 = vmatpush1.msra.mxu0 %v1363
    %1399 = vmatprep.subr.mxu0 0.0
    %1400 = vmatpush1.msra.mxu0 %v1364
    %1401 = vmatprep.subr.mxu0 0.0
    %1402 = vmatpush1.msra.mxu0 %v1365
    %1403 = vmatprep.subr.mxu0 0.0
    %1404 = vmatpush1.msra.mxu0 %v1366
    %1405 = vmatprep.subr.mxu0 0.0
    %1406 = vmatpush1.msra.mxu0 %v1367
    %1407 = vmatprep.subr.mxu0 0.0
    %1408 = vmatpush1.msra.mxu0 %v1368
    %1409 = vmatprep.subr.mxu0 0.0
    %1410 = vmatpush1.msra.mxu0 %v1369
    %1411 = vmatprep.subr.mxu0 0.0
    %1412 = vmatpush1.msra.mxu0 %v1370
    %1413 = vmatprep.subr.mxu0 0.0
    %1414 = vmatpush1.msra.mxu0 %v1371
    %1415 = vmatprep.subr.mxu0 0.0
    %1416 = vmatpush1.msra.mxu0 %v1372
    %1417 = vmatprep.subr.mxu0 0.0
    %1418 = vmatpush1.msra.mxu0 %v1373
    %1419 = vmatprep.subr.mxu0 0.0
    %1420 = vmatpush1.msra.mxu0 %v1374
    %1421 = vmatprep.subr.mxu0 0.0
    %1422 = vmatpush1.msra.mxu0 %v1375
    %1423 = vmatprep.subr.mxu0 0.0
    %1424 = vmatpush1.msra.mxu0 %v1376
    %1425 = vmatprep.subr.mxu0 0.0
    %1426 = vmatpush1.msra.mxu0 %v1377
    %1427 = vmatprep.subr.mxu0 0.0
    %1428 = vmatpush1.msra.mxu0 %v1378
    %1429 = vmatprep.subr.mxu0 0.0
    %1430 = vmatpush1.msra.mxu0 %v1379
    %1431 = vmatprep.subr.mxu0 0.0
    %1432 = vmatpush1.msra.mxu0 %v1380
    %1433 = vmatprep.subr.mxu0 0.0
    %1434 = vmatpush1.msra.mxu0 %v1381
    %1435 = vmatprep.subr.mxu0 0.0
    %1436 = vmatpush1.msra.mxu0 %v1382
    %1437 = vmatprep.subr.mxu0 0.0
    %1438 = vmatpush1.msra.mxu0 %v1383
    %1439 = vmatprep.subr.mxu0 0.0
    %1440 = vmatpush1.msra.mxu0 %v1384
    %1441 = vmatprep.subr.mxu0 0.0
    %1442 = vmatpush1.msra.mxu0 %v1385
    %1443 = vmatprep.subr.mxu0 0.0
    %1444 = vmatpush1.msra.mxu0 %v1386
    %1445 = vmatprep.subr.mxu0 0.0
    %1446 = vmatpush1.msra.mxu0 %v1387
    %1447 = vmatprep.subr.mxu0 0.0
    %1448 = vmatpush1.msra.mxu0 %v1388
    %1449 = vmatprep.subr.mxu0 0.0
    %1450 = vmatpush1.msra.mxu0 %v1389
    %1451 = vmatprep.subr.mxu0 0.0
    %1452 = vmatpush1.msra.mxu0 %v1390
    %1453 = vmatprep.subr.mxu0 0.0
    %1454 = vmatpush1.msra.mxu0 %v1391
    %1455 = vmatprep.subr.mxu0 0.0
    %1456 = vmatpush1.msra.mxu0 %v1392
    %1457 = vmatprep.mubr.f32.mxu0 %v1286
    %1458 = vmatmul.mubr.f32.gmra.mrb[0].mxu0 %v1285
    %v1459 = vpop.f32.mrb[0].mxu0
    %v1460 = vadd.f32 0.0, %v1459
    %v1461 = vpop.f32.mrb[0].mxu0
    %1462 = vmatprep.mubr.f32.mxu0 %v1288
    %1463 = vmatmul.mubr.f32.gmra.mrb[0].mxu0 %v1287
    %v1464 = vpop.f32.mrb[0].mxu0
    %v1465 = vadd.f32 0.0, %v1464
    %v1466 = vpop.f32.mrb[0].mxu0
    %1467 = vmatprep.mubr.f32.mxu0 %v1290
    %1468 = vmatmul.mubr.f32.gmra.mrb[0].mxu0 %v1289
    %v1469 = vpop.f32.mrb[0].mxu0
    %v1470 = vadd.f32 0.0, %v1469
    %v1471 = vpop.f32.mrb[0].mxu0
    %1472 = vmatprep.mubr.f32.mxu0 %v1292
    %1473 = vmatmul.mubr.f32.gmra.mrb[0].mxu0 %v1291
    %v1474 = vpop.f32.mrb[0].mxu0
    %v1475 = vadd.f32 0.0, %v1474
    %v1476 = vpop.f32.mrb[0].mxu0
    %1477 = vmatprep.mubr.f32.mxu0 %v1294
    %1478 = vmatmul.mubr.f32.gmra.mrb[0].mxu0 %v1293
    %v1479 = vpop.f32.mrb[0].mxu0
    %v1480 = vadd.f32 0.0, %v1479
    %v1481 = vpop.f32.mrb[0].mxu0
    %1482 = vdwg.mxu0
    %v1488 = vrot.slane %v1460, 1
    %v1489 = vrot.slane %v1465, 1
    %v1490 = vsel %vm643, %v1488, %v1489
    %v1491 = vrot.slane %v1470, 1
    %v1492 = vsel %vm643, %v1489, %v1491
    %v1493 = vrot.slane %v1475, 1
    %v1494 = vsel %vm643, %v1491, %v1493
    %v1495 = vrot.slane %v1480, 1
    %v1496 = vsel %vm643, %v1493, %v1495
    %v1502 = vrot.slane %v1460, 7
    %v1504 = vsel %vm455, %v1495, %v1502
    %v1505 = vmax.f32 %v1460, %v1490
    %v1506 = vmax.f32 %v1465, %v1492
    %v1507 = vmax.f32 %v1470, %v1494
    %v1508 = vmax.f32 %v1475, %v1496
    %v1509 = vmax.f32 %v1480, %v1504
    %v1510 = vand.u32 %v1296, 1
    %v1511 = vand.u32 %v1297, 1
    %v1512 = vmul.u32 %v1510, 17
    %v1513 = vmul.u32 %v1511, 17
    %v1514 = vadd.s32 %v1296, %v1512
    %v1515 = vadd.s32 %v1297, %v1513
    %vm1516 = vcmp.eq.s32.totalorder %v323, %v1514
    %vm1517 = vcmp.eq.s32.totalorder %v323, %v1515
    %v1518 = vsel %vm1516, 1.0, 0.0
    %v1519 = vsel %vm1517, 1.0, 0.0
    %vm1520 = vcmask 277504
    %v1522 = vsel %vm1520, %v1518, 0
    %v1525 = vsel %vm1520, %v1519, 0
    %v1528 = vsel %vm364, %v1509, 0
    %1530 = vmatprep.subr.mxu0 0.0
    %1531 = vmatpush1.msra.mxu0 %v1505
    %1532 = vmatprep.subr.mxu0 0.0
    %1533 = vmatpush1.msra.mxu0 %v1506
    %1534 = vmatprep.subr.mxu0 0.0
    %1535 = vmatpush1.msra.mxu0 %v1507
    %1536 = vmatprep.subr.mxu0 0.0
    %1537 = vmatpush1.msra.mxu0 %v1508
    %1538 = vmatprep.subr.mxu0 0.0
    %1539 = vmatpush1.msra.mxu0 %v1528
    %1540 = vmatprep.subr.mxu0 0.0
    %1541 = vmatpush1.msra.mxu0 0.0
    %1542 = vmatprep.subr.mxu0 0.0
    %1543 = vmatpush1.msra.mxu0 0.0
    %1544 = vmatprep.subr.mxu0 0.0
    %1545 = vmatpush1.msra.mxu0 0.0
    %1546 = vmatprep.subr.mxu0 0.0
    %1547 = vmatpush1.msra.mxu0 0.0
    %1548 = vmatprep.subr.mxu0 0.0
    %1549 = vmatpush1.msra.mxu0 0.0
    %1550 = vmatprep.subr.mxu0 0.0
    %1551 = vmatpush1.msra.mxu0 0.0
    %1552 = vmatprep.subr.mxu0 0.0
    %1553 = vmatpush1.msra.mxu0 0.0
    %1554 = vmatprep.subr.mxu0 0.0
    %1555 = vmatpush1.msra.mxu0 0.0
    %1556 = vmatprep.subr.mxu0 0.0
    %1557 = vmatpush1.msra.mxu0 0.0
    %1558 = vmatprep.subr.mxu0 0.0
    %1559 = vmatpush1.msra.mxu0 0.0
    %1560 = vmatprep.subr.mxu0 0.0
    %1561 = vmatpush1.msra.mxu0 0.0
    %1562 = vmatprep.subr.mxu0 0.0
    %1563 = vmatpush1.msra.mxu0 0.0
    %1564 = vmatprep.subr.mxu0 0.0
    %1565 = vmatpush1.msra.mxu0 0.0
    %1566 = vmatprep.subr.mxu0 0.0
    %1567 = vmatpush1.msra.mxu0 0.0
    %1568 = vmatprep.subr.mxu0 0.0
    %1569 = vmatpush1.msra.mxu0 0.0
    %1570 = vmatprep.subr.mxu0 0.0
    %1571 = vmatpush1.msra.mxu0 0.0
    %1572 = vmatprep.subr.mxu0 0.0
    %1573 = vmatpush1.msra.mxu0 0.0
    %1574 = vmatprep.subr.mxu0 0.0
    %1575 = vmatpush1.msra.mxu0 0.0
    %1576 = vmatprep.subr.mxu0 0.0
    %1577 = vmatpush1.msra.mxu0 0.0
    %1578 = vmatprep.subr.mxu0 0.0
    %1579 = vmatpush1.msra.mxu0 0.0
    %1580 = vmatprep.subr.mxu0 0.0
    %1581 = vmatpush1.msra.mxu0 0.0
    %1582 = vmatprep.subr.mxu0 0.0
    %1583 = vmatpush1.msra.mxu0 0.0
    %1584 = vmatprep.subr.mxu0 0.0
    %1585 = vmatpush1.msra.mxu0 0.0
    %1586 = vmatprep.subr.mxu0 0.0
    %1587 = vmatpush1.msra.mxu0 0.0
    %1588 = vmatprep.subr.mxu0 0.0
    %1589 = vmatpush1.msra.mxu0 0.0
    %1590 = vmatprep.subr.mxu0 0.0
    %1591 = vmatpush1.msra.mxu0 0.0
    %1592 = vmatprep.subr.mxu0 0.0
    %1593 = vmatpush1.msra.mxu0 0.0
    %1594 = vmatprep.mubr.f32.mxu0 0.0
    %1595 = vmatmul.mubr.f32.gmra.mrb[0].mxu0 %v1522
    %v1596 = vpop.f32.mrb[0].mxu0
    %v1597 = vadd.f32 0.0, %v1596
    %v1598 = vpop.f32.mrb[0].mxu0
    %1599 = vmatprep.mubr.f32.mxu0 0.0
    %1600 = vmatmul.mubr.f32.gmra.mrb[0].mxu0 %v1525
    %v1601 = vpop.f32.mrb[0].mxu0
    %v1602 = vadd.f32 0.0, %v1601
    %v1603 = vpop.f32.mrb[0].mxu0
    %1604 = vdwg.mxu0
    %v1606 = vrot.slane %v1597, 2
    %v1608 = vrot.slane %v1597, 4
    %v1610 = vrot.slane %v1597, 6
    %v1613 = vrot.slane %v1602, 2
    %v1615 = vrot.slane %v1602, 4
    %v1617 = vrot.slane %v1602, 6
    %s1619 = smul.u32 1024, 1
    %s1620 = sshll.u32 %s1619, 4
    %1621 = dma.done [#allocation3], %s1620
    %v1622 = vld [vmem:[#allocation2] sm:$0xff]
    %v1623 = vld [vmem:[#allocation2 + $0x8] sm:$0xff]
    %v1624 = vld [vmem:[#allocation2 + $0x10] sm:$0xff]
    %v1625 = vld [vmem:[#allocation2 + $0x18] sm:$0xff]
    %v1626 = vld [vmem:[#allocation2 + $0x20] sm:$0xff]
    %v1627 = vld [vmem:[#allocation2 + $0x28] sm:$0xff]
    %v1628 = vld [vmem:[#allocation2 + $0x30] sm:$0xff]
    %v1629 = vld [vmem:[#allocation2 + $0x38] sm:$0xff]
    %v1630 = vld [vmem:[#allocation2 + $0x40] sm:$0xff]
    %v1631 = vld [vmem:[#allocation2 + $0x48] sm:$0xff]
    %v1632 = vld [vmem:[#allocation2 + $0x50] sm:$0xff]
    %v1633 = vld [vmem:[#allocation2 + $0x58] sm:$0xff]
    %v1634 = vld [vmem:[#allocation2 + $0x60] sm:$0xff]
    %v1635 = vld [vmem:[#allocation2 + $0x68] sm:$0xff]
    %v1636 = vld [vmem:[#allocation2 + $0x70] sm:$0xff]
    %v1637 = vld [vmem:[#allocation2 + $0x78] sm:$0xff]
    %v1638 = vld [vmem:[#allocation2 + $0x80] sm:$0xff]
    %v1639 = vld [vmem:[#allocation2 + $0x88] sm:$0xff]
    %v1640 = vld [vmem:[#allocation2 + $0x90] sm:$0xff]
    %v1641 = vld [vmem:[#allocation2 + $0x98] sm:$0xff]
    %v1642 = vld [vmem:[#allocation2 + $0xa0] sm:$0xff]
    %v1643 = vld [vmem:[#allocation2 + $0xa8] sm:$0xff]
    %v1644 = vld [vmem:[#allocation2 + $0xb0] sm:$0xff]
    %v1645 = vld [vmem:[#allocation2 + $0xb8] sm:$0xff]
    %v1646 = vld [vmem:[#allocation2 + $0xc0] sm:$0xff]
    %v1647 = vld [vmem:[#allocation2 + $0xc8] sm:$0xff]
    %v1648 = vld [vmem:[#allocation2 + $0xd0] sm:$0xff]
    %v1649 = vld [vmem:[#allocation2 + $0xd8] sm:$0xff]
    %v1650 = vld [vmem:[#allocation2 + $0xe0] sm:$0xff]
    %v1651 = vld [vmem:[#allocation2 + $0xe8] sm:$0xff]
    %v1652 = vld [vmem:[#allocation2 + $0xf0] sm:$0xff]
    %v1653 = vld [vmem:[#allocation2 + $0xf8] sm:$0xff]
    %v1654 = vld [vmem:[#allocation2 + $0x100] sm:$0xff]
    %v1655 = vld [vmem:[#allocation2 + $0x108] sm:$0xff]
    %v1656 = vld [vmem:[#allocation2 + $0x110] sm:$0xff]
    %v1657 = vld [vmem:[#allocation2 + $0x118] sm:$0xff]
    %v1658 = vld [vmem:[#allocation2 + $0x120] sm:$0xff]
    %v1659 = vld [vmem:[#allocation2 + $0x128] sm:$0xff]
    %v1660 = vld [vmem:[#allocation2 + $0x130] sm:$0xff]
    %v1661 = vld [vmem:[#allocation2 + $0x138] sm:$0xff]
    %v1662 = vld [vmem:[#allocation2 + $0x140] sm:$0xff]
    %v1663 = vld [vmem:[#allocation2 + $0x148] sm:$0xff]
    %v1664 = vld [vmem:[#allocation2 + $0x150] sm:$0xff]
    %v1665 = vld [vmem:[#allocation2 + $0x158] sm:$0xff]
    %v1666 = vld [vmem:[#allocation2 + $0x160] sm:$0xff]
    %v1667 = vld [vmem:[#allocation2 + $0x168] sm:$0xff]
    %v1668 = vld [vmem:[#allocation2 + $0x170] sm:$0xff]
    %v1669 = vld [vmem:[#allocation2 + $0x178] sm:$0xff]
    %v1670 = vld [vmem:[#allocation2 + $0x180] sm:$0xff]
    %v1671 = vld [vmem:[#allocation2 + $0x188] sm:$0xff]
    %v1672 = vld [vmem:[#allocation2 + $0x190] sm:$0xff]
    %v1673 = vld [vmem:[#allocation2 + $0x198] sm:$0xff]
    %v1674 = vld [vmem:[#allocation2 + $0x1a0] sm:$0xff]
    %v1675 = vld [vmem:[#allocation2 + $0x1a8] sm:$0xff]
    %v1676 = vld [vmem:[#allocation2 + $0x1b0] sm:$0xff]
    %v1677 = vld [vmem:[#allocation2 + $0x1b8] sm:$0xff]
    %v1678 = vld [vmem:[#allocation2 + $0x1c0] sm:$0xff]
    %v1679 = vld [vmem:[#allocation2 + $0x1c8] sm:$0xff]
    %v1680 = vld [vmem:[#allocation2 + $0x1d0] sm:$0xff]
    %v1681 = vld [vmem:[#allocation2 + $0x1d8] sm:$0xff]
    %v1682 = vld [vmem:[#allocation2 + $0x1e0] sm:$0xff]
    %v1683 = vld [vmem:[#allocation2 + $0x1e8] sm:$0xff]
    %v1684 = vld [vmem:[#allocation2 + $0x1f0] sm:$0xff]
    %v1685 = vld [vmem:[#allocation2 + $0x1f8] sm:$0xff]
    %v1686 = vld [vmem:[#allocation2 + $0x200] sm:$0xff]
    %v1687 = vld [vmem:[#allocation2 + $0x208] sm:$0xff]
    %v1688 = vld [vmem:[#allocation2 + $0x210] sm:$0xff]
    %v1689 = vld [vmem:[#allocation2 + $0x218] sm:$0xff]
    %v1690 = vld [vmem:[#allocation2 + $0x220] sm:$0xff]
    %v1691 = vld [vmem:[#allocation2 + $0x228] sm:$0xff]
    %v1692 = vld [vmem:[#allocation2 + $0x230] sm:$0xff]
    %v1693 = vld [vmem:[#allocation2 + $0x238] sm:$0xff]
    %v1694 = vld [vmem:[#allocation2 + $0x240] sm:$0xff]
    %v1695 = vld [vmem:[#allocation2 + $0x248] sm:$0xff]
    %v1696 = vld [vmem:[#allocation2 + $0x250] sm:$0xff]
    %v1697 = vld [vmem:[#allocation2 + $0x258] sm:$0xff]
    %v1698 = vld [vmem:[#allocation2 + $0x260] sm:$0xff]
    %v1699 = vld [vmem:[#allocation2 + $0x268] sm:$0xff]
    %v1700 = vld [vmem:[#allocation2 + $0x270] sm:$0xff]
    %v1701 = vld [vmem:[#allocation2 + $0x278] sm:$0xff]
    %v1702 = vld [vmem:[#allocation2 + $0x280] sm:$0xff]
    %v1703 = vld [vmem:[#allocation2 + $0x288] sm:$0xff]
    %v1704 = vld [vmem:[#allocation2 + $0x290] sm:$0xff]
    %v1705 = vld [vmem:[#allocation2 + $0x298] sm:$0xff]
    %v1706 = vld [vmem:[#allocation2 + $0x2a0] sm:$0xff]
    %v1707 = vld [vmem:[#allocation2 + $0x2a8] sm:$0xff]
    %v1708 = vld [vmem:[#allocation2 + $0x2b0] sm:$0xff]
    %v1709 = vld [vmem:[#allocation2 + $0x2b8] sm:$0xff]
    %v1710 = vld [vmem:[#allocation2 + $0x2c0] sm:$0xff]
    %v1711 = vld [vmem:[#allocation2 + $0x2c8] sm:$0xff]
    %v1712 = vld [vmem:[#allocation2 + $0x2d0] sm:$0xff]
    %v1713 = vld [vmem:[#allocation2 + $0x2d8] sm:$0xff]
    %v1714 = vld [vmem:[#allocation2 + $0x2e0] sm:$0xff]
    %v1715 = vld [vmem:[#allocation2 + $0x2e8] sm:$0xff]
    %v1716 = vld [vmem:[#allocation2 + $0x2f0] sm:$0xff]
    %v1717 = vld [vmem:[#allocation2 + $0x2f8] sm:$0xff]
    %v1718 = vld [vmem:[#allocation2 + $0x300] sm:$0xff]
    %v1719 = vld [vmem:[#allocation2 + $0x308] sm:$0xff]
    %v1720 = vld [vmem:[#allocation2 + $0x310] sm:$0xff]
    %v1721 = vld [vmem:[#allocation2 + $0x318] sm:$0xff]
    %v1722 = vld [vmem:[#allocation2 + $0x320] sm:$0xff]
    %v1723 = vld [vmem:[#allocation2 + $0x328] sm:$0xff]
    %v1724 = vld [vmem:[#allocation2 + $0x330] sm:$0xff]
    %v1725 = vld [vmem:[#allocation2 + $0x338] sm:$0xff]
    %v1726 = vld [vmem:[#allocation2 + $0x340] sm:$0xff]
    %v1727 = vld [vmem:[#allocation2 + $0x348] sm:$0xff]
    %v1728 = vld [vmem:[#allocation2 + $0x350] sm:$0xff]
    %v1729 = vld [vmem:[#allocation2 + $0x358] sm:$0xff]
    %v1730 = vld [vmem:[#allocation2 + $0x360] sm:$0xff]
    %v1731 = vld [vmem:[#allocation2 + $0x368] sm:$0xff]
    %v1732 = vld [vmem:[#allocation2 + $0x370] sm:$0xff]
    %v1733 = vld [vmem:[#allocation2 + $0x378] sm:$0xff]
    %v1734 = vld [vmem:[#allocation2 + $0x380] sm:$0xff]
    %v1735 = vld [vmem:[#allocation2 + $0x388] sm:$0xff]
    %v1736 = vld [vmem:[#allocation2 + $0x390] sm:$0xff]
    %v1737 = vld [vmem:[#allocation2 + $0x398] sm:$0xff]
    %v1738 = vld [vmem:[#allocation2 + $0x3a0] sm:$0xff]
    %v1739 = vld [vmem:[#allocation2 + $0x3a8] sm:$0xff]
    %v1740 = vld [vmem:[#allocation2 + $0x3b0] sm:$0xff]
    %v1741 = vld [vmem:[#allocation2 + $0x3b8] sm:$0xff]
    %v1742 = vld [vmem:[#allocation2 + $0x3c0] sm:$0xff]
    %v1743 = vld [vmem:[#allocation2 + $0x3c8] sm:$0xff]
    %v1744 = vld [vmem:[#allocation2 + $0x3d0] sm:$0xff]
    %v1745 = vld [vmem:[#allocation2 + $0x3d8] sm:$0xff]
    %v1746 = vld [vmem:[#allocation2 + $0x3e0] sm:$0xff]
    %v1747 = vld [vmem:[#allocation2 + $0x3e8] sm:$0xff]
    %v1748 = vld [vmem:[#allocation2 + $0x3f0] sm:$0xff]
    %v1749 = vld [vmem:[#allocation2 + $0x3f8] sm:$0xff]
    %v1750 = vld [vmem:[%s4] sm:$0x1]
    %v1752 = vlaneseq
    %v1753 = vshrl.u32 %v1752, 7
    %v1754 = vsub.s32 0, %v1753
    %v1755 = vrot.slane %v1750, %v1754
    %1757 = vmatprep.subr.mxu0 0.0
    %1758 = vmatpush1.msra.mxu0 %v1622
    %1759 = vmatprep.subr.mxu0 0.0
    %1760 = vmatpush1.msra.mxu0 %v1623
    %1761 = vmatprep.subr.mxu0 0.0
    %1762 = vmatpush1.msra.mxu0 %v1624
    %1763 = vmatprep.subr.mxu0 0.0
    %1764 = vmatpush1.msra.mxu0 %v1625
    %1765 = vmatprep.subr.mxu0 0.0
    %1766 = vmatpush1.msra.mxu0 %v1626
    %1767 = vmatprep.subr.mxu0 0.0
    %1768 = vmatpush1.msra.mxu0 %v1627
    %1769 = vmatprep.subr.mxu0 0.0
    %1770 = vmatpush1.msra.mxu0 %v1628
    %1771 = vmatprep.subr.mxu0 0.0
    %1772 = vmatpush1.msra.mxu0 %v1629
    %1773 = vmatprep.subr.mxu0 0.0
    %1774 = vmatpush1.msra.mxu0 %v1630
    %1775 = vmatprep.subr.mxu0 0.0
    %1776 = vmatpush1.msra.mxu0 %v1631
    %1777 = vmatprep.subr.mxu0 0.0
    %1778 = vmatpush1.msra.mxu0 %v1632
    %1779 = vmatprep.subr.mxu0 0.0
    %1780 = vmatpush1.msra.mxu0 %v1633
    %1781 = vmatprep.subr.mxu0 0.0
    %1782 = vmatpush1.msra.mxu0 %v1634
    %1783 = vmatprep.subr.mxu0 0.0
    %1784 = vmatpush1.msra.mxu0 %v1635
    %1785 = vmatprep.subr.mxu0 0.0
    %1786 = vmatpush1.msra.mxu0 %v1636
    %1787 = vmatprep.subr.mxu0 0.0
    %1788 = vmatpush1.msra.mxu0 %v1637
    %1789 = vmatprep.subr.mxu0 0.0
    %1790 = vmatpush1.msra.mxu0 %v1638
    %1791 = vmatprep.subr.mxu0 0.0
    %1792 = vmatpush1.msra.mxu0 %v1639
    %1793 = vmatprep.subr.mxu0 0.0
    %1794 = vmatpush1.msra.mxu0 %v1640
    %1795 = vmatprep.subr.mxu0 0.0
    %1796 = vmatpush1.msra.mxu0 %v1641
    %1797 = vmatprep.subr.mxu0 0.0
    %1798 = vmatpush1.msra.mxu0 %v1642
    %1799 = vmatprep.subr.mxu0 0.0
    %1800 = vmatpush1.msra.mxu0 %v1643
    %1801 = vmatprep.subr.mxu0 0.0
    %1802 = vmatpush1.msra.mxu0 %v1644
    %1803 = vmatprep.subr.mxu0 0.0
    %1804 = vmatpush1.msra.mxu0 %v1645
    %1805 = vmatprep.subr.mxu0 0.0
    %1806 = vmatpush1.msra.mxu0 %v1646
    %1807 = vmatprep.subr.mxu0 0.0
    %1808 = vmatpush1.msra.mxu0 %v1647
    %1809 = vmatprep.subr.mxu0 0.0
    %1810 = vmatpush1.msra.mxu0 %v1648
    %1811 = vmatprep.subr.mxu0 0.0
    %1812 = vmatpush1.msra.mxu0 %v1649
    %1813 = vmatprep.subr.mxu0 0.0
    %1814 = vmatpush1.msra.mxu0 %v1650
    %1815 = vmatprep.subr.mxu0 0.0
    %1816 = vmatpush1.msra.mxu0 %v1651
    %1817 = vmatprep.subr.mxu0 0.0
    %1818 = vmatpush1.msra.mxu0 %v1652
    %1819 = vmatprep.subr.mxu0 0.0
    %1820 = vmatpush1.msra.mxu0 %v1653
    %1821 = vmatprep.mubr.f32.mxu0 %v1606
    %1822 = vmatmul.mubr.f32.gmra.mrb[0].mxu0 %v1597
    %v1823 = vpop.f32.mrb[0].mxu0
    %v1824 = vadd.f32 %v1755, %v1823
    %v1825 = vpop.f32.mrb[0].mxu0
    %1826 = vdwg.mxu0
    %1827 = vmatprep.subr.mxu0 0.0
    %1828 = vmatpush1.msra.mxu0 %v1654
    %1829 = vmatprep.subr.mxu0 0.0
    %1830 = vmatpush1.msra.mxu0 %v1655
    %1831 = vmatprep.subr.mxu0 0.0
    %1832 = vmatpush1.msra.mxu0 %v1656
    %1833 = vmatprep.subr.mxu0 0.0
    %1834 = vmatpush1.msra.mxu0 %v1657
    %1835 = vmatprep.subr.mxu0 0.0
    %1836 = vmatpush1.msra.mxu0 %v1658
    %1837 = vmatprep.subr.mxu0 0.0
    %1838 = vmatpush1.msra.mxu0 %v1659
    %1839 = vmatprep.subr.mxu0 0.0
    %1840 = vmatpush1.msra.mxu0 %v1660
    %1841 = vmatprep.subr.mxu0 0.0
    %1842 = vmatpush1.msra.mxu0 %v1661
    %1843 = vmatprep.subr.mxu0 0.0
    %1844 = vmatpush1.msra.mxu0 %v1662
    %1845 = vmatprep.subr.mxu0 0.0
    %1846 = vmatpush1.msra.mxu0 %v1663
    %1847 = vmatprep.subr.mxu0 0.0
    %1848 = vmatpush1.msra.mxu0 %v1664
    %1849 = vmatprep.subr.mxu0 0.0
    %1850 = vmatpush1.msra.mxu0 %v1665
    %1851 = vmatprep.subr.mxu0 0.0
    %1852 = vmatpush1.msra.mxu0 %v1666
    %1853 = vmatprep.subr.mxu0 0.0
    %1854 = vmatpush1.msra.mxu0 %v1667
    %1855 = vmatprep.subr.mxu0 0.0
    %1856 = vmatpush1.msra.mxu0 %v1668
    %1857 = vmatprep.subr.mxu0 0.0
    %1858 = vmatpush1.msra.mxu0 %v1669
    %1859 = vmatprep.subr.mxu0 0.0
    %1860 = vmatpush1.msra.mxu0 %v1670
    %1861 = vmatprep.subr.mxu0 0.0
    %1862 = vmatpush1.msra.mxu0 %v1671
    %1863 = vmatprep.subr.mxu0 0.0
    %1864 = vmatpush1.msra.mxu0 %v1672
    %1865 = vmatprep.subr.mxu0 0.0
    %1866 = vmatpush1.msra.mxu0 %v1673
    %1867 = vmatprep.subr.mxu0 0.0
    %1868 = vmatpush1.msra.mxu0 %v1674
    %1869 = vmatprep.subr.mxu0 0.0
    %1870 = vmatpush1.msra.mxu0 %v1675
    %1871 = vmatprep.subr.mxu0 0.0
    %1872 = vmatpush1.msra.mxu0 %v1676
    %1873 = vmatprep.subr.mxu0 0.0
    %1874 = vmatpush1.msra.mxu0 %v1677
    %1875 = vmatprep.subr.mxu0 0.0
    %1876 = vmatpush1.msra.mxu0 %v1678
    %1877 = vmatprep.subr.mxu0 0.0
    %1878 = vmatpush1.msra.mxu0 %v1679
    %1879 = vmatprep.subr.mxu0 0.0
    %1880 = vmatpush1.msra.mxu0 %v1680
    %1881 = vmatprep.subr.mxu0 0.0
    %1882 = vmatpush1.msra.mxu0 %v1681
    %1883 = vmatprep.subr.mxu0 0.0
    %1884 = vmatpush1.msra.mxu0 %v1682
    %1885 = vmatprep.subr.mxu0 0.0
    %1886 = vmatpush1.msra.mxu0 %v1683
    %1887 = vmatprep.subr.mxu0 0.0
    %1888 = vmatpush1.msra.mxu0 %v1684
    %1889 = vmatprep.subr.mxu0 0.0
    %1890 = vmatpush1.msra.mxu0 %v1685
    %1891 = vmatprep.mubr.f32.mxu0 %v1610
    %1892 = vmatmul.mubr.f32.gmra.mrb[0].mxu0 %v1608
    %v1893 = vpop.f32.mrb[0].mxu0
    %v1894 = vadd.f32 %v1824, %v1893
    %v1895 = vpop.f32.mrb[0].mxu0
    %1896 = vdwg.mxu0
    %1897 = vmatprep.subr.mxu0 0.0
    %1898 = vmatpush1.msra.mxu0 %v1686
    %1899 = vmatprep.subr.mxu0 0.0
    %1900 = vmatpush1.msra.mxu0 %v1687
    %1901 = vmatprep.subr.mxu0 0.0
    %1902 = vmatpush1.msra.mxu0 %v1688
    %1903 = vmatprep.subr.mxu0 0.0
    %1904 = vmatpush1.msra.mxu0 %v1689
    %1905 = vmatprep.subr.mxu0 0.0
    %1906 = vmatpush1.msra.mxu0 %v1690
    %1907 = vmatprep.subr.mxu0 0.0
    %1908 = vmatpush1.msra.mxu0 %v1691
    %1909 = vmatprep.subr.mxu0 0.0
    %1910 = vmatpush1.msra.mxu0 %v1692
    %1911 = vmatprep.subr.mxu0 0.0
    %1912 = vmatpush1.msra.mxu0 %v1693
    %1913 = vmatprep.subr.mxu0 0.0
    %1914 = vmatpush1.msra.mxu0 %v1694
    %1915 = vmatprep.subr.mxu0 0.0
    %1916 = vmatpush1.msra.mxu0 %v1695
    %1917 = vmatprep.subr.mxu0 0.0
    %1918 = vmatpush1.msra.mxu0 %v1696
    %1919 = vmatprep.subr.mxu0 0.0
    %1920 = vmatpush1.msra.mxu0 %v1697
    %1921 = vmatprep.subr.mxu0 0.0
    %1922 = vmatpush1.msra.mxu0 %v1698
    %1923 = vmatprep.subr.mxu0 0.0
    %1924 = vmatpush1.msra.mxu0 %v1699
    %1925 = vmatprep.subr.mxu0 0.0
    %1926 = vmatpush1.msra.mxu0 %v1700
    %1927 = vmatprep.subr.mxu0 0.0
    %1928 = vmatpush1.msra.mxu0 %v1701
    %1929 = vmatprep.subr.mxu0 0.0
    %1930 = vmatpush1.msra.mxu0 %v1702
    %1931 = vmatprep.subr.mxu0 0.0
    %1932 = vmatpush1.msra.mxu0 %v1703
    %1933 = vmatprep.subr.mxu0 0.0
    %1934 = vmatpush1.msra.mxu0 %v1704
    %1935 = vmatprep.subr.mxu0 0.0
    %1936 = vmatpush1.msra.mxu0 %v1705
    %1937 = vmatprep.subr.mxu0 0.0
    %1938 = vmatpush1.msra.mxu0 %v1706
    %1939 = vmatprep.subr.mxu0 0.0
    %1940 = vmatpush1.msra.mxu0 %v1707
    %1941 = vmatprep.subr.mxu0 0.0
    %1942 = vmatpush1.msra.mxu0 %v1708
    %1943 = vmatprep.subr.mxu0 0.0
    %1944 = vmatpush1.msra.mxu0 %v1709
    %1945 = vmatprep.subr.mxu0 0.0
    %1946 = vmatpush1.msra.mxu0 %v1710
    %1947 = vmatprep.subr.mxu0 0.0
    %1948 = vmatpush1.msra.mxu0 %v1711
    %1949 = vmatprep.subr.mxu0 0.0
    %1950 = vmatpush1.msra.mxu0 %v1712
    %1951 = vmatprep.subr.mxu0 0.0
    %1952 = vmatpush1.msra.mxu0 %v1713
    %1953 = vmatprep.subr.mxu0 0.0
    %1954 = vmatpush1.msra.mxu0 %v1714
    %1955 = vmatprep.subr.mxu0 0.0
    %1956 = vmatpush1.msra.mxu0 %v1715
    %1957 = vmatprep.subr.mxu0 0.0
    %1958 = vmatpush1.msra.mxu0 %v1716
    %1959 = vmatprep.subr.mxu0 0.0
    %1960 = vmatpush1.msra.mxu0 %v1717
    %1961 = vmatprep.mubr.f32.mxu0 %v1613
    %1962 = vmatmul.mubr.f32.gmra.mrb[0].mxu0 %v1602
    %v1963 = vpop.f32.mrb[0].mxu0
    %v1964 = vadd.f32 %v1894, %v1963
    %v1965 = vpop.f32.mrb[0].mxu0
    %1966 = vdwg.mxu0
    %1967 = vmatprep.subr.mxu0 0.0
    %1968 = vmatpush1.msra.mxu0 %v1718
    %1969 = vmatprep.subr.mxu0 0.0
    %1970 = vmatpush1.msra.mxu0 %v1719
    %1971 = vmatprep.subr.mxu0 0.0
    %1972 = vmatpush1.msra.mxu0 %v1720
    %1973 = vmatprep.subr.mxu0 0.0
    %1974 = vmatpush1.msra.mxu0 %v1721
    %1975 = vmatprep.subr.mxu0 0.0
    %1976 = vmatpush1.msra.mxu0 %v1722
    %1977 = vmatprep.subr.mxu0 0.0
    %1978 = vmatpush1.msra.mxu0 %v1723
    %1979 = vmatprep.subr.mxu0 0.0
    %1980 = vmatpush1.msra.mxu0 %v1724
    %1981 = vmatprep.subr.mxu0 0.0
    %1982 = vmatpush1.msra.mxu0 %v1725
    %1983 = vmatprep.subr.mxu0 0.0
    %1984 = vmatpush1.msra.mxu0 %v1726
    %1985 = vmatprep.subr.mxu0 0.0
    %1986 = vmatpush1.msra.mxu0 %v1727
    %1987 = vmatprep.subr.mxu0 0.0
    %1988 = vmatpush1.msra.mxu0 %v1728
    %1989 = vmatprep.subr.mxu0 0.0
    %1990 = vmatpush1.msra.mxu0 %v1729
    %1991 = vmatprep.subr.mxu0 0.0
    %1992 = vmatpush1.msra.mxu0 %v1730
    %1993 = vmatprep.subr.mxu0 0.0
    %1994 = vmatpush1.msra.mxu0 %v1731
    %1995 = vmatprep.subr.mxu0 0.0
    %1996 = vmatpush1.msra.mxu0 %v1732
    %1997 = vmatprep.subr.mxu0 0.0
    %1998 = vmatpush1.msra.mxu0 %v1733
    %1999 = vmatprep.subr.mxu0 0.0
    %2000 = vmatpush1.msra.mxu0 %v1734
    %2001 = vmatprep.subr.mxu0 0.0
    %2002 = vmatpush1.msra.mxu0 %v1735
    %2003 = vmatprep.subr.mxu0 0.0
    %2004 = vmatpush1.msra.mxu0 %v1736
    %2005 = vmatprep.subr.mxu0 0.0
    %2006 = vmatpush1.msra.mxu0 %v1737
    %2007 = vmatprep.subr.mxu0 0.0
    %2008 = vmatpush1.msra.mxu0 %v1738
    %2009 = vmatprep.subr.mxu0 0.0
    %2010 = vmatpush1.msra.mxu0 %v1739
    %2011 = vmatprep.subr.mxu0 0.0
    %2012 = vmatpush1.msra.mxu0 %v1740
    %2013 = vmatprep.subr.mxu0 0.0
    %2014 = vmatpush1.msra.mxu0 %v1741
    %2015 = vmatprep.subr.mxu0 0.0
    %2016 = vmatpush1.msra.mxu0 %v1742
    %2017 = vmatprep.subr.mxu0 0.0
    %2018 = vmatpush1.msra.mxu0 %v1743
    %2019 = vmatprep.subr.mxu0 0.0
    %2020 = vmatpush1.msra.mxu0 %v1744
    %2021 = vmatprep.subr.mxu0 0.0
    %2022 = vmatpush1.msra.mxu0 %v1745
    %2023 = vmatprep.subr.mxu0 0.0
    %2024 = vmatpush1.msra.mxu0 %v1746
    %2025 = vmatprep.subr.mxu0 0.0
    %2026 = vmatpush1.msra.mxu0 %v1747
    %2027 = vmatprep.subr.mxu0 0.0
    %2028 = vmatpush1.msra.mxu0 %v1748
    %2029 = vmatprep.subr.mxu0 0.0
    %2030 = vmatpush1.msra.mxu0 %v1749
    %2031 = vmatprep.mubr.f32.mxu0 %v1617
    %2032 = vmatmul.mubr.f32.gmra.mrb[0].mxu0 %v1615
    %v2033 = vpop.f32.mrb[0].mxu0
    %v2034 = vadd.f32 %v1964, %v2033
    %v2035 = vpop.f32.mrb[0].mxu0
    %2036 = vdwg.mxu0
    %vm2037 = vcmask 517120
    %2038 = vst.msk [vmem:[#allocation4] sm:$0x3] %vm2037, %v2034
    // Predicated region
    $region56: #{source_image_encoder.1} parent=1 // pred_check
      _
    $region57: #{source_image_encoder.1} parent=1 // pred_check_branch
      %2040 = sbr.rel (0) target = $region59
    $region58: #{source_image_encoder.1} parent=1 // pred_region
      %s2042 = ssub.s32 32, 32
      %2043 = vsyncadd [#allocation5], %s2042
      %s2045 = sshll.u32 [#allocation4], 4
      %s2046 = int_to_ptr.vmem [resolvable:$true] %s2045
      %2048 = dma.vmem_to_hbm [thread:$0]  %s2046, 32, %s6, [#allocation5]
    $region59: #{source_image_encoder.1} parent=1 // pred_fallthru
      _
    // Predicated region
    $region60: #{source_image_encoder.1} parent=1 // pred_check
      _
    $region61: #{source_image_encoder.1} parent=1 // pred_check_branch
      %2050 = sbr.rel (0) target = $region63
    $region62: #{source_image_encoder.1} parent=1 // pred_region
      %2051 = dma.done [#allocation5], 32
    $region63: #{source_image_encoder.1} parent=1 // pred_fallthru
      _
    %2052 = vsyncpa [#allocation5], 1
  %2053 = vsyncmov [#allocation3]
  %s2054 = vpop.sfrf %2053
  %p2055 = scmp.eq.s32.totalorder %s2054, 0
  %p2056 = pneg %p2055
  %2058 = shalt.err (%p2056)

</llo_original>
